<compile_context>
chip_gen: v6e
topology: v6e:2x2x1
jax: 0.10.0
libtpu: 0.0.40
codegen_flags: <defaults>
</compile_context>

<pallas_src>
import functools

import jax
import jax.numpy as jnp
from jax.experimental import pallas as pl
from jax.experimental.pallas import tpu as pltpu


def _embedding_net_kernel(x_ref,
                          w1_ref, b1_ref,
                          w2_ref, b2_ref,
                          w3_ref, b3_ref,
                          w4_ref, b4_ref,
                          o_ref):
    x = x_ref[...]

    # Hoist bias loads (JAX does not CSE broadcast_in_dim).
    b1 = b1_ref[...]
    b2 = b2_ref[...]
    b3 = b3_ref[...]
    b4 = b4_ref[...]

    # All matmuls: (possibly bf16) operands, f32 accumulation on the MXU.
    h = jnp.dot(x, w1_ref[...], preferred_element_type=jnp.float32) + b1
    h = jnp.maximum(h, 0.0)

    h = jnp.dot(h.astype(w2_ref.dtype), w2_ref[...],
                preferred_element_type=jnp.float32) + b2
    h = jnp.maximum(h, 0.0)

    h = jnp.dot(h.astype(w3_ref.dtype), w3_ref[...],
                preferred_element_type=jnp.float32) + b3
    h = jnp.maximum(h, 0.0)

    h = jnp.dot(h.astype(w4_ref.dtype), w4_ref[...],
                preferred_element_type=jnp.float32) + b4

    # F.normalize(x, p=2, dim=-1): x / max(||x||_2, 1e-12)
    #   == x * rsqrt(max(sum(x*x), 1e-24)).
    # The zero-padded output columns contribute 0 to the sum, so this equals
    # the unpadded 200-wide normalization.  sum -> XLU, rsqrt -> EUP: both are
    # off the MXU-push slot, so the epilogue is effectively free.
    sumsq = jnp.sum(h * h, axis=-1, keepdims=True)
    inv = jax.lax.rsqrt(jnp.maximum(sumsq, 1e-24))
    o_ref[...] = (h * inv).astype(o_ref.dtype)


def _round_up(n, m):
    return (n + m - 1) // m * m


def _cdiv(a, b):
    return (a + b - 1) // b


def _pick_batch_tiling(B, target_block_m, row_align):
    """Adaptive batch tiling.

    - Tiny batches are padded only to the sublane multiple (no 8->256 blowup).
    - Batches larger than the target are split into balanced tiles.
    - When there is enough work (>= 256 rows) the grid gets >= 2 steps so the
      "parallel" axis can shard across v7x's two TensorCores.
    """
    Bq = _round_up(B, row_align)
    if Bq <= target_block_m:
        block_m = Bq
        if Bq >= 256:                                   # worth splitting across 2 TCs
            block_m = _round_up(_cdiv(Bq, 2), row_align)
    else:
        n_steps = _cdiv(Bq, target_block_m)             # >= 2 here
        block_m = _round_up(_cdiv(Bq, n_steps), row_align)
    Bp = _round_up(Bq, block_m)
    return Bp, block_m


def _estimate_vmem_bytes(D, block_m, out_pad, op_bytes):
    # Double-buffered weights / x / out tiles + the largest f32 intermediate (h1).
    weights = 2 * op_bytes * (D * 1024 + 1024 * 512 + 512 * 256 + 256 * out_pad)
    biases = 2 * 4 * (1024 + 512 + 256 + out_pad)
    x_tile = 2 * op_bytes * block_m * D
    out_tile = 2 * 4 * block_m * out_pad
    h1 = 4 * block_m * 1024
    return weights + biases + x_tile + out_tile + h1


@functools.partial(jax.jit, static_argnames=("block_m", "use_bf16"))
def embedding_net_forward(x, params, *, block_m=512, use_bf16=True):
    """x: [B, embedding_dim] float32. Returns [B, 200] float32.

    block_m: target batch tile (sweep 256/512/1024 for large batches; small
             batches automatically use a smaller tile).
    use_bf16: bf16 MXU operands with f32 accumulation (default). Set False for
              tight numerical parity with the f32 reference.
    """
    (w1, b1), (w2, b2), (w3, b3), (w4, b4) = params
    B, D = x.shape
    out_dim = w4.shape[1]                      # 200
    out_pad = _round_up(out_dim, 128)          # 256: lane-dense output slab

    compute_dtype = jnp.bfloat16 if use_bf16 else jnp.float32
    op_bytes = 2 if use_bf16 else 4
    row_align = 16 if use_bf16 else 8          # sublane packing of the operand dtype

    Bp, blk_m = _pick_batch_tiling(B, block_m, row_align)

    # Zero-pad fc4 output columns to a multiple of 128 (L2 norm unchanged —
    # padded columns are exactly zero; do NOT pad with non-zero values).
    w4p = jnp.pad(w4, ((0, 0), (0, out_pad - out_dim)))
    b4p = jnp.pad(b4, ((0, 0), (0, out_pad - out_dim)))

    # Pad batch to a multiple of blk_m; padded rows are sliced away below.
    xp = jnp.pad(x, ((0, Bp - B), (0, 0))).astype(compute_dtype)
    w1c, w2c, w3c, w4c = (w.astype(compute_dtype) for w in (w1, w2, w3, w4p))
    # Biases stay f32: they are added to the f32 accumulator.

    # VMEM budget guard (v7x has only 64 MiB physical VMEM per TensorCore).
    est = _estimate_vmem_bytes(D, blk_m, out_pad, op_bytes)
    vmem_budget = 48 * 1024 * 1024
    if est > vmem_budget:
        # TODO(synk): add a K-grid axis over embedding_dim for fc1 (accumulate
        # partial products) instead of keeping w1 fully resident.
        raise ValueError(
            f"resident weights + tiles (~{est >> 20} MiB) exceed the "
            f"{vmem_budget >> 20} MiB VMEM budget; reduce block_m or K-split fc1")
    vmem_limit = max(32 * 1024 * 1024, min(vmem_budget, 2 * est))

    grid = (Bp // blk_m,)

    def resident(shape):
        # Fully VMEM-resident across the whole grid: the constant index_map
        # means the pipeline fetches each weight/bias once and never refetches.
        return pl.BlockSpec(shape, lambda i: (0, 0))

    out = pl.pallas_call(
        _embedding_net_kernel,
        out_shape=jax.ShapeDtypeStruct((Bp, out_pad), jnp.float32),
        grid_spec=pltpu.PrefetchScalarGridSpec(
            num_scalar_prefetch=0,
            grid=grid,
            in_specs=[
                pl.BlockSpec((blk_m, D), lambda i: (i, 0)),   # x tile
                resident(w1c.shape), resident(b1.shape),
                resident(w2c.shape), resident(b2.shape),
                resident(w3c.shape), resident(b3.shape),
                resident(w4c.shape), resident(b4p.shape),
            ],
            out_specs=pl.BlockSpec((blk_m, out_pad), lambda i: (i, 0)),
        ),
        compiler_params=pltpu.CompilerParams(
            dimension_semantics=("parallel",),      # shards across v7x's 2 TCs
            vmem_limit_bytes=vmem_limit,
        ),
    )(xp, w1c, b1, w2c, b2, w3c, b3, w4c, b4p)

    return out[:B, :out_dim]


def init_params(key, embedding_dim):
    """Deterministic synthetic parameters with the module's shapes.

    fc1: embedding_dim -> 1024, fc2: 1024 -> 512, fc3: 512 -> 256,
    fc4: 256 -> 200.  Weights stored as [in, out]; biases as [1, out].
    """
    dims = [(embedding_dim, 1024), (1024, 512), (512, 256), (256, 200)]
    params = []
    for i, (fan_in, fan_out) in enumerate(dims):
        kw, kb = jax.random.split(jax.random.fold_in(key, i))
        bound = 1.0 / jnp.sqrt(fan_in)
        w = jax.random.uniform(kw, (fan_in, fan_out), jnp.float32, -bound, bound)
        b = jax.random.uniform(kb, (1, fan_out), jnp.float32, -bound, bound)
        params.append((w, b))
    return params


def reference_forward(x, params):
    h = x
    for i, (w, b) in enumerate(params):
        h = h @ w + b
        if i < 3:
            h = jnp.maximum(h, 0.0)
    norm = jnp.sqrt(jnp.sum(h * h, axis=-1, keepdims=True))
    return h / jnp.maximum(norm, 1e-12)


if __name__ == "__main__":
    key = jax.random.PRNGKey(0)
    embedding_dim = 32
    batch = 8

    kx, kp = jax.random.split(key)
    x = jax.random.normal(kx, (batch, embedding_dim), dtype=jnp.float32)
    params = init_params(kp, embedding_dim)

    ref = reference_forward(x, params)

    # f32 escape hatch: tight numerical parity with the reference.
    out_f32 = jax.block_until_ready(embedding_net_forward(x, params, use_bf16=False))
    assert out_f32.shape == (batch, 200), out_f32.shape
    assert jnp.allclose(out_f32, ref, atol=2e-5, rtol=2e-5), "f32 path mismatch"

    # Default path: bf16 MXU operands, f32 accumulation (looser tolerance).
    out = jax.block_until_ready(embedding_net_forward(x, params))
    assert out.shape == (batch, 200), out.shape
    assert jnp.allclose(out, ref, atol=3e-2, rtol=3e-2), "bf16 path mismatch"

    print("KERNEL_OK")
</pallas_src>

<mosaic_0001>
module attributes {stable_mosaic.version = 11 : i64} {
  func.func @_embedding_net_kernel(%arg0: i32, %arg1: memref<8x32xf32, #tpu.memory_space<vmem>>, %arg2: memref<32x1024xf32, #tpu.memory_space<vmem>>, %arg3: memref<1x1024xf32, #tpu.memory_space<vmem>>, %arg4: memref<1024x512xf32, #tpu.memory_space<vmem>>, %arg5: memref<1x512xf32, #tpu.memory_space<vmem>>, %arg6: memref<512x256xf32, #tpu.memory_space<vmem>>, %arg7: memref<1x256xf32, #tpu.memory_space<vmem>>, %arg8: memref<256x256xf32, #tpu.memory_space<vmem>>, %arg9: memref<1x256xf32, #tpu.memory_space<vmem>>, %arg10: memref<8x256xf32, #tpu.memory_space<vmem>>) attributes {dimension_semantics = [#tpu.dimension_semantics<parallel>], iteration_bounds = array<i64: 1>, scalar_prefetch = 0 : i64, scratch_operands = 0 : i64, tpu.core_type = #tpu.core_type<tc>, window_params = [{transform_indices = @transform_0, window_bounds = array<i64: 8, 32>}, {pipeline_mode = #tpu.pipeline_mode<synchronous>, transform_indices = @transform_1, window_bounds = array<i64: 32, 1024>}, {pipeline_mode = #tpu.pipeline_mode<synchronous>, transform_indices = @transform_2, window_bounds = array<i64: 1, 1024>}, {pipeline_mode = #tpu.pipeline_mode<synchronous>, transform_indices = @transform_3, window_bounds = array<i64: 1024, 512>}, {pipeline_mode = #tpu.pipeline_mode<synchronous>, transform_indices = @transform_4, window_bounds = array<i64: 1, 512>}, {pipeline_mode = #tpu.pipeline_mode<synchronous>, transform_indices = @transform_5, window_bounds = array<i64: 512, 256>}, {pipeline_mode = #tpu.pipeline_mode<synchronous>, transform_indices = @transform_6, window_bounds = array<i64: 1, 256>}, {pipeline_mode = #tpu.pipeline_mode<synchronous>, transform_indices = @transform_7, window_bounds = array<i64: 256, 256>}, {pipeline_mode = #tpu.pipeline_mode<synchronous>, transform_indices = @transform_8, window_bounds = array<i64: 1, 256>}, {transform_indices = @transform_9, window_bounds = array<i64: 8, 256>}]} {
    %c0 = arith.constant 0 : index
    %c0_0 = arith.constant 0 : index
    %0 = vector.load %arg1[%c0, %c0_0] : memref<8x32xf32, #tpu.memory_space<vmem>>, vector<8x32xf32>
    %c0_1 = arith.constant 0 : index
    %c0_2 = arith.constant 0 : index
    %1 = vector.load %arg3[%c0_1, %c0_2] : memref<1x1024xf32, #tpu.memory_space<vmem>>, vector<1x1024xf32>
    %c0_3 = arith.constant 0 : index
    %c0_4 = arith.constant 0 : index
    %2 = vector.load %arg5[%c0_3, %c0_4] : memref<1x512xf32, #tpu.memory_space<vmem>>, vector<1x512xf32>
    %c0_5 = arith.constant 0 : index
    %c0_6 = arith.constant 0 : index
    %3 = vector.load %arg7[%c0_5, %c0_6] : memref<1x256xf32, #tpu.memory_space<vmem>>, vector<1x256xf32>
    %c0_7 = arith.constant 0 : index
    %c0_8 = arith.constant 0 : index
    %4 = vector.load %arg9[%c0_7, %c0_8] : memref<1x256xf32, #tpu.memory_space<vmem>>, vector<1x256xf32>
    %c0_9 = arith.constant 0 : index
    %c0_10 = arith.constant 0 : index
    %5 = vector.load %arg2[%c0_9, %c0_10] : memref<32x1024xf32, #tpu.memory_space<vmem>>, vector<32x1024xf32>
    %cst = arith.constant dense<0.000000e+00> : vector<8x1024xf32>
    %6 = tpu.matmul %0, %5, %cst {dimension_numbers = #tpu.dot_dimension_numbers<[1], [0], [0], [1], [0, 0, 1, 1], [], []>} : vector<8x32xf32>, vector<32x1024xf32>, vector<8x1024xf32> -> vector<8x1024xf32>
    %7 = vector.broadcast %1 : vector<1x1024xf32> to vector<8x1024xf32>
    %8 = arith.addf %6, %7 : vector<8x1024xf32>
    %cst_11 = arith.constant 0.000000e+00 : f32
    %9 = vector.broadcast %cst_11 : f32 to vector<8x1024xf32>
    %10 = arith.maximumf %8, %9 : vector<8x1024xf32>
    %c0_12 = arith.constant 0 : index
    %c0_13 = arith.constant 0 : index
    %11 = vector.load %arg4[%c0_12, %c0_13] : memref<1024x512xf32, #tpu.memory_space<vmem>>, vector<1024x512xf32>
    %cst_14 = arith.constant dense<0.000000e+00> : vector<8x512xf32>
    %12 = tpu.matmul %10, %11, %cst_14 {dimension_numbers = #tpu.dot_dimension_numbers<[1], [0], [0], [1], [0, 0, 1, 1], [], []>} : vector<8x1024xf32>, vector<1024x512xf32>, vector<8x512xf32> -> vector<8x512xf32>
    %13 = vector.broadcast %2 : vector<1x512xf32> to vector<8x512xf32>
    %14 = arith.addf %12, %13 : vector<8x512xf32>
    %cst_15 = arith.constant 0.000000e+00 : f32
    %15 = vector.broadcast %cst_15 : f32 to vector<8x512xf32>
    %16 = arith.maximumf %14, %15 : vector<8x512xf32>
    %c0_16 = arith.constant 0 : index
    %c0_17 = arith.constant 0 : index
    %17 = vector.load %arg6[%c0_16, %c0_17] : memref<512x256xf32, #tpu.memory_space<vmem>>, vector<512x256xf32>
    %cst_18 = arith.constant dense<0.000000e+00> : vector<8x256xf32>
    %18 = tpu.matmul %16, %17, %cst_18 {dimension_numbers = #tpu.dot_dimension_numbers<[1], [0], [0], [1], [0, 0, 1, 1], [], []>} : vector<8x512xf32>, vector<512x256xf32>, vector<8x256xf32> -> vector<8x256xf32>
    %19 = vector.broadcast %3 : vector<1x256xf32> to vector<8x256xf32>
    %20 = arith.addf %18, %19 : vector<8x256xf32>
    %cst_19 = arith.constant 0.000000e+00 : f32
    %21 = vector.broadcast %cst_19 : f32 to vector<8x256xf32>
    %22 = arith.maximumf %20, %21 : vector<8x256xf32>
    %c0_20 = arith.constant 0 : index
    %c0_21 = arith.constant 0 : index
    %23 = vector.load %arg8[%c0_20, %c0_21] : memref<256x256xf32, #tpu.memory_space<vmem>>, vector<256x256xf32>
    %cst_22 = arith.constant dense<0.000000e+00> : vector<8x256xf32>
    %24 = tpu.matmul %22, %23, %cst_22 {dimension_numbers = #tpu.dot_dimension_numbers<[1], [0], [0], [1], [0, 0, 1, 1], [], []>} : vector<8x256xf32>, vector<256x256xf32>, vector<8x256xf32> -> vector<8x256xf32>
    %25 = vector.broadcast %4 : vector<1x256xf32> to vector<8x256xf32>
    %26 = arith.addf %24, %25 : vector<8x256xf32>
    %27 = arith.mulf %26, %26 : vector<8x256xf32>
    %cst_23 = arith.constant dense<0.000000e+00> : vector<8xf32>
    %28 = vector.multi_reduction <add>, %27, %cst_23 [1] : vector<8x256xf32> to vector<8xf32>
    %29 = vector.shape_cast %28 : vector<8xf32> to vector<8x1xf32>
    %cst_24 = arith.constant 1.000000e-24 : f32
    %30 = vector.broadcast %cst_24 : f32 to vector<8x1xf32>
    %31 = arith.maximumf %29, %30 : vector<8x1xf32>
    %32 = math.rsqrt %31 : vector<8x1xf32>
    %33 = vector.broadcast %32 : vector<8x1xf32> to vector<8x256xf32>
    %34 = arith.mulf %26, %33 : vector<8x256xf32>
    %c0_25 = arith.constant 0 : index
    %c0_26 = arith.constant 0 : index
    %35 = vector.load %arg10[%c0_25, %c0_26] : memref<8x256xf32, #tpu.memory_space<vmem>>, vector<8x256xf32>
    tpu.vector_store %arg10[%c0_25, %c0_26], %34 {strides = array<i32>} : memref<8x256xf32, #tpu.memory_space<vmem>>, vector<8x256xf32>,
    return
  }
  func.func @transform_0(%arg0: i32) -> (i32, i32) {
    %c0_i32 = arith.constant 0 : i32
    %c0_i32_0 = arith.constant 0 : i32
    return %arg0, %c0_i32 : i32, i32
  }
  func.func @transform_1(%arg0: i32) -> (i32, i32) {
    %c0_i32 = arith.constant 0 : i32
    %c0_i32_0 = arith.constant 0 : i32
    %c0_i32_1 = arith.constant 0 : i32
    return %c0_i32, %c0_i32_0 : i32, i32
  }
  func.func @transform_2(%arg0: i32) -> (i32, i32) {
    %c0_i32 = arith.constant 0 : i32
    %c0_i32_0 = arith.constant 0 : i32
    %c0_i32_1 = arith.constant 0 : i32
    return %c0_i32, %c0_i32_0 : i32, i32
  }
  func.func @transform_3(%arg0: i32) -> (i32, i32) {
    %c0_i32 = arith.constant 0 : i32
    %c0_i32_0 = arith.constant 0 : i32
    %c0_i32_1 = arith.constant 0 : i32
    return %c0_i32, %c0_i32_0 : i32, i32
  }
  func.func @transform_4(%arg0: i32) -> (i32, i32) {
    %c0_i32 = arith.constant 0 : i32
    %c0_i32_0 = arith.constant 0 : i32
    %c0_i32_1 = arith.constant 0 : i32
    return %c0_i32, %c0_i32_0 : i32, i32
  }
  func.func @transform_5(%arg0: i32) -> (i32, i32) {
    %c0_i32 = arith.constant 0 : i32
    %c0_i32_0 = arith.constant 0 : i32
    %c0_i32_1 = arith.constant 0 : i32
    return %c0_i32, %c0_i32_0 : i32, i32
  }
  func.func @transform_6(%arg0: i32) -> (i32, i32) {
    %c0_i32 = arith.constant 0 : i32
    %c0_i32_0 = arith.constant 0 : i32
    %c0_i32_1 = arith.constant 0 : i32
    return %c0_i32, %c0_i32_0 : i32, i32
  }
  func.func @transform_7(%arg0: i32) -> (i32, i32) {
    %c0_i32 = arith.constant 0 : i32
    %c0_i32_0 = arith.constant 0 : i32
    %c0_i32_1 = arith.constant 0 : i32
    return %c0_i32, %c0_i32_0 : i32, i32
  }
  func.func @transform_8(%arg0: i32) -> (i32, i32) {
    %c0_i32 = arith.constant 0 : i32
    %c0_i32_0 = arith.constant 0 : i32
    %c0_i32_1 = arith.constant 0 : i32
    return %c0_i32, %c0_i32_0 : i32, i32
  }
  func.func @transform_9(%arg0: i32) -> (i32, i32) {
    %c0_i32 = arith.constant 0 : i32
    %c0_i32_0 = arith.constant 0 : i32
    return %arg0, %c0_i32 : i32, i32
  }
}

</mosaic_0001>

<llo_original>
// kernel: embedding_net_forward.1
$region0: #{embedding_net_forward.1}
  #allocation0 [shape = 'u32[]', space=smem, size = 0x4, offset = 0x4, fixed_abs, tag = 'smem constant byte address 0x4 - core index']
  #allocation1 [shape = 'u32[144,128]{1,0:T(1,128)}', space=vmem, size = 0x12000, scoped, tag = 'internal scratch']
  %s0 = inlined_call_operand.hbm [shape: f32[8,32], index: 0, kind: input, shape index: {}]
  %s1 = inlined_call_operand.hbm [shape: f32[32,1024], index: 1, kind: input, shape index: {}]
  %s2 = inlined_call_operand.hbm [shape: f32[1,1024], index: 2, kind: input, shape index: {}]
  %s3 = inlined_call_operand.hbm [shape: f32[1024,512], index: 3, kind: input, shape index: {}]
  %s4 = inlined_call_operand.hbm [shape: f32[1,512], index: 4, kind: input, shape index: {}]
  %s5 = inlined_call_operand.hbm [shape: f32[512,256], index: 5, kind: input, shape index: {}]
  %s6 = inlined_call_operand.hbm [shape: f32[1,256], index: 6, kind: input, shape index: {}]
  %s7 = inlined_call_operand.vmem [shape: f32[256,256], index: 7, kind: input, shape index: {}]
  %s8 = inlined_call_operand.vmem [shape: f32[1,256], index: 8, kind: input, shape index: {}]
  %s9 = inlined_call_operand.hbm [shape: f32[8,256], index: 9, kind: output, shape index: {}]
  %s10 = sld [smem:[#allocation0]]
  $region74: #{embedding_net_forward.1} parent=0
    _
  %s12 = ssub.s32 1, %s10
  %s13 = scalar_select 0, %s12, %s10
  $region1: #{embedding_net_forward.1} parent=0
    #allocation2 [shape = 'u8[4096]{0}', space=vmem, size = 0x1000, scoped, tag = 'input window, operand 0, single buffered']
    #allocation3 [shape = 's32[1]{0}', space=sflag, size = 0x4, scoped, tag = 'scoped memory for embedding_net_forward.1']
    #allocation4 [shape = 's32[1]{0}', space=sflag, size = 0x4, scoped, tag = 'scoped memory for embedding_net_forward.1']
    #allocation5 [shape = 'u8[131072]{0}', space=vmem, size = 0x20000, scoped, tag = 'input window, operand 1, single buffered']
    #allocation6 [shape = 's32[1]{0}', space=sflag, size = 0x4, scoped, tag = 'scoped memory for embedding_net_forward.1']
    #allocation7 [shape = 'u8[4096]{0}', space=vmem, size = 0x1000, scoped, tag = 'input window, operand 2, single buffered']
    #allocation8 [shape = 'u8[2097152]{0}', space=vmem, size = 0x200000, scoped, tag = 'input window, operand 3, single buffered']
    #allocation9 [shape = 's32[1]{0}', space=sflag, size = 0x4, scoped, tag = 'scoped memory for embedding_net_forward.1']
    #allocation10 [shape = 'u8[2048]{0}', space=vmem, size = 0x800, scoped, tag = 'input window, operand 4, single buffered']
    #allocation11 [shape = 'u8[524288]{0}', space=vmem, size = 0x80000, scoped, tag = 'input window, operand 5, single buffered']
    #allocation12 [shape = 's32[1]{0}', space=sflag, size = 0x4, scoped, tag = 'scoped memory for embedding_net_forward.1']
    #allocation13 [shape = 'u8[1024]{0}', space=vmem, size = 0x400, scoped, tag = 'input window, operand 6, single buffered']
    #allocation14 [shape = 'u8[8192]{0}', space=vmem, size = 0x2000, scoped, tag = 'output window, operand 0, single buffered']
    %14 = vsyncpa [#allocation3], 0
    %15 = vsyncpa [#allocation6], 0
    %16 = vsyncpa [#allocation9], 0
    %17 = vsyncpa [#allocation12], 0
    %18 = vsyncpa [#allocation4], 0
    // Predicated region
    $region2: #{embedding_net_forward.1} parent=1 // pred_check
      _
    $region3: #{embedding_net_forward.1} parent=1 // pred_check_branch
      %20 = sbr.rel (0) target = $region5
    $region4: #{embedding_net_forward.1} parent=1 // pred_region
      %s22 = ssub.s32 128, 128
      %23 = vsyncadd [#allocation3], %s22
      %s25 = sshll.u32 [#allocation2], 4
      %s26 = int_to_ptr.vmem [resolvable:$true] %s25
      %28 = dma.hbm_to_vmem [thread:$0]  %s0, 128, %s26, [#allocation3]
    $region5: #{embedding_net_forward.1} parent=1 // pred_fallthru
      _
    // Predicated region
    $region6: #{embedding_net_forward.1} parent=1 // pred_check
      _
    $region7: #{embedding_net_forward.1} parent=1 // pred_check_branch
      %30 = sbr.rel (0) target = $region9
    $region8: #{embedding_net_forward.1} parent=1 // pred_region
      %s32 = ssub.s32 4096, 4096
      %33 = vsyncadd [#allocation6], %s32
      %s34 = sshll.u32 [#allocation5], 4
      %s35 = int_to_ptr.vmem [resolvable:$true] %s34
      %40 = dma.hbm_to_vmem [thread:$0]  %s1, 4096, %s35, [#allocation6], 1024, 1024, 64
    $region9: #{embedding_net_forward.1} parent=1 // pred_fallthru
      _
    // Predicated region
    $region10: #{embedding_net_forward.1} parent=1 // pred_check
      _
    $region11: #{embedding_net_forward.1} parent=1 // pred_check_branch
      %42 = sbr.rel (0) target = $region13
    $region12: #{embedding_net_forward.1} parent=1 // pred_region
      %s44 = ssub.s32 128, 128
      %45 = vsyncadd [#allocation6], %s44
      %s47 = sshll.u32 [#allocation7], 4
      %s48 = int_to_ptr.vmem [resolvable:$true] %s47
      %50 = dma.hbm_to_vmem [thread:$0]  %s2, 128, %s48, [#allocation6]
    $region13: #{embedding_net_forward.1} parent=1 // pred_fallthru
      _
    // Predicated region
    $region14: #{embedding_net_forward.1} parent=1 // pred_check
      _
    $region15: #{embedding_net_forward.1} parent=1 // pred_check_branch
      %52 = sbr.rel (0) target = $region17
    $region16: #{embedding_net_forward.1} parent=1 // pred_region
      %s54 = ssub.s32 65536, 65536
      %55 = vsyncadd [#allocation9], %s54
      %s56 = sshll.u32 [#allocation8], 4
      %s57 = int_to_ptr.vmem [resolvable:$true] %s56
      %62 = dma.hbm_to_vmem [thread:$0]  %s3, 65536, %s57, [#allocation9], 512, 512, 32
    $region17: #{embedding_net_forward.1} parent=1 // pred_fallthru
      _
    // Predicated region
    $region18: #{embedding_net_forward.1} parent=1 // pred_check
      _
    $region19: #{embedding_net_forward.1} parent=1 // pred_check_branch
      %64 = sbr.rel (0) target = $region21
    $region20: #{embedding_net_forward.1} parent=1 // pred_region
      %s66 = ssub.s32 64, 64
      %67 = vsyncadd [#allocation9], %s66
      %s69 = sshll.u32 [#allocation10], 4
      %s70 = int_to_ptr.vmem [resolvable:$true] %s69
      %72 = dma.hbm_to_vmem [thread:$0]  %s4, 64, %s70, [#allocation9]
    $region21: #{embedding_net_forward.1} parent=1 // pred_fallthru
      _
    // Predicated region
    $region22: #{embedding_net_forward.1} parent=1 // pred_check
      _
    $region23: #{embedding_net_forward.1} parent=1 // pred_check_branch
      %74 = sbr.rel (0) target = $region25
    $region24: #{embedding_net_forward.1} parent=1 // pred_region
      %s76 = ssub.s32 16384, 16384
      %77 = vsyncadd [#allocation12], %s76
      %s78 = sshll.u32 [#allocation11], 4
      %s79 = int_to_ptr.vmem [resolvable:$true] %s78
      %84 = dma.hbm_to_vmem [thread:$0]  %s5, 16384, %s79, [#allocation12], 256, 256, 16
    $region25: #{embedding_net_forward.1} parent=1 // pred_fallthru
      _
    // Predicated region
    $region26: #{embedding_net_forward.1} parent=1 // pred_check
      _
    $region27: #{embedding_net_forward.1} parent=1 // pred_check_branch
      %86 = sbr.rel (0) target = $region29
    $region28: #{embedding_net_forward.1} parent=1 // pred_region
      %s88 = ssub.s32 32, 32
      %89 = vsyncadd [#allocation12], %s88
      %s91 = sshll.u32 [#allocation13], 4
      %s92 = int_to_ptr.vmem [resolvable:$true] %s91
      %94 = dma.hbm_to_vmem [thread:$0]  %s6, 32, %s92, [#allocation12]
    $region29: #{embedding_net_forward.1} parent=1 // pred_fallthru
      _
    // Predicated region
    $region30: #{embedding_net_forward.1} parent=1 // pred_check
      _
    $region31: #{embedding_net_forward.1} parent=1 // pred_check_branch
      %96 = sbr.rel (0) target = $region33
    $region32: #{embedding_net_forward.1} parent=1 // pred_region
      _
    $region33: #{embedding_net_forward.1} parent=1 // pred_fallthru
      _
    // Predicated region
    $region34: #{embedding_net_forward.1} parent=1 // pred_check
      _
    $region35: #{embedding_net_forward.1} parent=1 // pred_check_branch
      %98 = sbr.rel (0) target = $region37
    $region36: #{embedding_net_forward.1} parent=1 // pred_region
      _
    $region37: #{embedding_net_forward.1} parent=1 // pred_fallthru
      _
    // Predicated region
    $region38: #{embedding_net_forward.1} parent=1 // pred_check
      _
    $region39: #{embedding_net_forward.1} parent=1 // pred_check_branch
      %100 = sbr.rel (0) target = $region41
    $region40: #{embedding_net_forward.1} parent=1 // pred_region
      %101 = dma.done [#allocation3], 128
    $region41: #{embedding_net_forward.1} parent=1 // pred_fallthru
      _
    // Predicated region
    $region42: #{embedding_net_forward.1} parent=1 // pred_check
      _
    $region43: #{embedding_net_forward.1} parent=1 // pred_check_branch
      %103 = sbr.rel (0) target = $region45
    $region44: #{embedding_net_forward.1} parent=1 // pred_region
      %104 = dma.done [#allocation6], 4096
    $region45: #{embedding_net_forward.1} parent=1 // pred_fallthru
      _
    // Predicated region
    $region46: #{embedding_net_forward.1} parent=1 // pred_check
      _
    $region47: #{embedding_net_forward.1} parent=1 // pred_check_branch
      %106 = sbr.rel (0) target = $region49
    $region48: #{embedding_net_forward.1} parent=1 // pred_region
      %107 = dma.done [#allocation6], 128
    $region49: #{embedding_net_forward.1} parent=1 // pred_fallthru
      _
    // Predicated region
    $region50: #{embedding_net_forward.1} parent=1 // pred_check
      _
    $region51: #{embedding_net_forward.1} parent=1 // pred_check_branch
      %109 = sbr.rel (0) target = $region53
    $region52: #{embedding_net_forward.1} parent=1 // pred_region
      %110 = dma.done [#allocation9], 65536
    $region53: #{embedding_net_forward.1} parent=1 // pred_fallthru
      _
    // Predicated region
    $region54: #{embedding_net_forward.1} parent=1 // pred_check
      _
    $region55: #{embedding_net_forward.1} parent=1 // pred_check_branch
      %112 = sbr.rel (0) target = $region57
    $region56: #{embedding_net_forward.1} parent=1 // pred_region
      %113 = dma.done [#allocation9], 64
    $region57: #{embedding_net_forward.1} parent=1 // pred_fallthru
      _
    // Predicated region
    $region58: #{embedding_net_forward.1} parent=1 // pred_check
      _
    $region59: #{embedding_net_forward.1} parent=1 // pred_check_branch
      %115 = sbr.rel (0) target = $region61
    $region60: #{embedding_net_forward.1} parent=1 // pred_region
      %116 = dma.done [#allocation12], 16384
    $region61: #{embedding_net_forward.1} parent=1 // pred_fallthru
      _
    // Predicated region
    $region62: #{embedding_net_forward.1} parent=1 // pred_check
      _
    $region63: #{embedding_net_forward.1} parent=1 // pred_check_branch
      %118 = sbr.rel (0) target = $region65
    $region64: #{embedding_net_forward.1} parent=1 // pred_region
      %119 = dma.done [#allocation12], 32
    $region65: #{embedding_net_forward.1} parent=1 // pred_fallthru
      _
    %v120 = vld [vmem:[#allocation2] sm:$0xff]
    %v121 = vld [vmem:[#allocation7] sm:$0xff]
    %v122 = vld [vmem:[#allocation10] sm:$0xf]
    %v123 = vld [vmem:[#allocation13] sm:$0x3]
    %v124 = vld [vmem:[%s8] sm:$0x3]
    %v125 = vld [vmem:[#allocation5] sm:$0xff]
    %v126 = vld [vmem:[#allocation5 + $0x8] sm:$0xff]
    %v127 = vld [vmem:[#allocation5 + $0x10] sm:$0xff]
    %v128 = vld [vmem:[#allocation5 + $0x18] sm:$0xff]
    %v129 = vld [vmem:[#allocation5 + $0x20] sm:$0xff]
    %v130 = vld [vmem:[#allocation5 + $0x28] sm:$0xff]
    %v131 = vld [vmem:[#allocation5 + $0x30] sm:$0xff]
    %v132 = vld [vmem:[#allocation5 + $0x38] sm:$0xff]
    %v133 = vld [vmem:[#allocation5 + $0x40] sm:$0xff]
    %v134 = vld [vmem:[#allocation5 + $0x48] sm:$0xff]
    %v135 = vld [vmem:[#allocation5 + $0x50] sm:$0xff]
    %v136 = vld [vmem:[#allocation5 + $0x58] sm:$0xff]
    %v137 = vld [vmem:[#allocation5 + $0x60] sm:$0xff]
    %v138 = vld [vmem:[#allocation5 + $0x68] sm:$0xff]
    %v139 = vld [vmem:[#allocation5 + $0x70] sm:$0xff]
    %v140 = vld [vmem:[#allocation5 + $0x78] sm:$0xff]
    %v141 = vld [vmem:[#allocation5 + $0x80] sm:$0xff]
    %v142 = vld [vmem:[#allocation5 + $0x88] sm:$0xff]
    %v143 = vld [vmem:[#allocation5 + $0x90] sm:$0xff]
    %v144 = vld [vmem:[#allocation5 + $0x98] sm:$0xff]
    %v145 = vld [vmem:[#allocation5 + $0xa0] sm:$0xff]
    %v146 = vld [vmem:[#allocation5 + $0xa8] sm:$0xff]
    %v147 = vld [vmem:[#allocation5 + $0xb0] sm:$0xff]
    %v148 = vld [vmem:[#allocation5 + $0xb8] sm:$0xff]
    %v149 = vld [vmem:[#allocation5 + $0xc0] sm:$0xff]
    %v150 = vld [vmem:[#allocation5 + $0xc8] sm:$0xff]
    %v151 = vld [vmem:[#allocation5 + $0xd0] sm:$0xff]
    %v152 = vld [vmem:[#allocation5 + $0xd8] sm:$0xff]
    %v153 = vld [vmem:[#allocation5 + $0xe0] sm:$0xff]
    %v154 = vld [vmem:[#allocation5 + $0xe8] sm:$0xff]
    %v155 = vld [vmem:[#allocation5 + $0xf0] sm:$0xff]
    %v156 = vld [vmem:[#allocation5 + $0xf8] sm:$0xff]
    %v158 = vlaneseq
    %v159 = vshrl.u32 %v158, 7
    %v160 = vsub.s32 0, %v159
    %v161 = vrot.slane %v121, %v160
    %v162 = vlaneseq
    %v163 = vshrl.u32 %v162, 7
    %v164 = vsub.s32 1, %v163
    %v165 = vrot.slane %v121, %v164
    %v166 = vlaneseq
    %v167 = vshrl.u32 %v166, 7
    %v168 = vsub.s32 2, %v167
    %v169 = vrot.slane %v121, %v168
    %v170 = vlaneseq
    %v171 = vshrl.u32 %v170, 7
    %v172 = vsub.s32 3, %v171
    %v173 = vrot.slane %v121, %v172
    %v174 = vlaneseq
    %v175 = vshrl.u32 %v174, 7
    %v176 = vsub.s32 4, %v175
    %v177 = vrot.slane %v121, %v176
    %v178 = vlaneseq
    %v179 = vshrl.u32 %v178, 7
    %v180 = vsub.s32 5, %v179
    %v181 = vrot.slane %v121, %v180
    %v182 = vlaneseq
    %v183 = vshrl.u32 %v182, 7
    %v184 = vsub.s32 6, %v183
    %v185 = vrot.slane %v121, %v184
    %v186 = vlaneseq
    %v187 = vshrl.u32 %v186, 7
    %v188 = vsub.s32 7, %v187
    %v189 = vrot.slane %v121, %v188
    %vm198 = vcmask 261120
    %v200 = vsel %vm198, %v120, 0
    %202 = vmatprep.subr.mxu0 0.0
    %203 = vmatpush1.msra.mxu0 0.0
    %204 = vmatprep.subr.mxu0 0.0
    %205 = vmatpush1.msra.mxu0 0.0
    %206 = vmatprep.subr.mxu0 0.0
    %207 = vmatpush1.msra.mxu0 0.0
    %208 = vmatprep.subr.mxu0 0.0
    %209 = vmatpush1.msra.mxu0 0.0
    %210 = vmatprep.subr.mxu0 0.0
    %211 = vmatpush1.msra.mxu0 0.0
    %212 = vmatprep.subr.mxu0 0.0
    %213 = vmatpush1.msra.mxu0 0.0
    %214 = vmatprep.subr.mxu0 0.0
    %215 = vmatpush1.msra.mxu0 0.0
    %216 = vmatprep.subr.mxu0 0.0
    %217 = vmatpush1.msra.mxu0 0.0
    %218 = vmatprep.subr.mxu0 0.0
    %219 = vmatpush1.msra.mxu0 0.0
    %220 = vmatprep.subr.mxu0 0.0
    %221 = vmatpush1.msra.mxu0 0.0
    %222 = vmatprep.subr.mxu0 0.0
    %223 = vmatpush1.msra.mxu0 0.0
    %224 = vmatprep.subr.mxu0 0.0
    %225 = vmatpush1.msra.mxu0 0.0
    %226 = vmatprep.subr.mxu0 %v150
    %227 = vmatpush1.msra.mxu0 %v149
    %228 = vmatprep.subr.mxu0 %v142
    %229 = vmatpush1.msra.mxu0 %v141
    %230 = vmatprep.subr.mxu0 %v134
    %231 = vmatpush1.msra.mxu0 %v133
    %232 = vmatprep.subr.mxu0 %v126
    %233 = vmatpush1.msra.mxu0 %v125
    %234 = vmatprep.subr.mxu0 0.0
    %235 = vmatpush2.msra.mxu0 0.0
    %236 = vmatprep.subr.mxu0 0.0
    %237 = vmatpush2.msra.mxu0 0.0
    %238 = vmatprep.subr.mxu0 0.0
    %239 = vmatpush2.msra.mxu0 0.0
    %240 = vmatprep.subr.mxu0 0.0
    %241 = vmatpush2.msra.mxu0 0.0
    %242 = vmatprep.subr.mxu0 0.0
    %243 = vmatpush2.msra.mxu0 0.0
    %244 = vmatprep.subr.mxu0 0.0
    %245 = vmatpush2.msra.mxu0 0.0
    %246 = vmatprep.subr.mxu0 0.0
    %247 = vmatpush2.msra.mxu0 0.0
    %248 = vmatprep.subr.mxu0 0.0
    %249 = vmatpush2.msra.mxu0 0.0
    %250 = vmatprep.subr.mxu0 0.0
    %251 = vmatpush2.msra.mxu0 0.0
    %252 = vmatprep.subr.mxu0 0.0
    %253 = vmatpush2.msra.mxu0 0.0
    %254 = vmatprep.subr.mxu0 0.0
    %255 = vmatpush2.msra.mxu0 0.0
    %256 = vmatprep.subr.mxu0 0.0
    %257 = vmatpush2.msra.mxu0 0.0
    %258 = vmatprep.subr.mxu0 0.0
    %259 = vmatpush2.msra.mxu0 0.0
    %260 = vmatprep.subr.mxu0 0.0
    %261 = vmatpush2.msra.mxu0 0.0
    %262 = vmatprep.subr.mxu0 0.0
    %263 = vmatpush2.msra.mxu0 0.0
    %264 = vmatprep.subr.mxu0 0.0
    %265 = vmatpush2.msra.mxu0 0.0
    %266 = vmatprep.mubr.f32.mxu0 0.0
    %267 = vmatmul.mubr.f32.gmra.mxu0 %v200
    %v268 = vpop.f32.mrf.mxu0
    %v269 = vadd.f32 %v161, %v268
    %v270 = vpop.f32.mrf.mxu0
    %v271 = vadd.f32 %v165, %v270
    %272 = vdwg.mxu0
    %273 = vmatprep.subr.mxu0 0.0
    %274 = vmatpush1.msra.mxu0 0.0
    %275 = vmatprep.subr.mxu0 0.0
    %276 = vmatpush1.msra.mxu0 0.0
    %277 = vmatprep.subr.mxu0 0.0
    %278 = vmatpush1.msra.mxu0 0.0
    %279 = vmatprep.subr.mxu0 0.0
    %280 = vmatpush1.msra.mxu0 0.0
    %281 = vmatprep.subr.mxu0 0.0
    %282 = vmatpush1.msra.mxu0 0.0
    %283 = vmatprep.subr.mxu0 0.0
    %284 = vmatpush1.msra.mxu0 0.0
    %285 = vmatprep.subr.mxu0 0.0
    %286 = vmatpush1.msra.mxu0 0.0
    %287 = vmatprep.subr.mxu0 0.0
    %288 = vmatpush1.msra.mxu0 0.0
    %289 = vmatprep.subr.mxu0 0.0
    %290 = vmatpush1.msra.mxu0 0.0
    %291 = vmatprep.subr.mxu0 0.0
    %292 = vmatpush1.msra.mxu0 0.0
    %293 = vmatprep.subr.mxu0 0.0
    %294 = vmatpush1.msra.mxu0 0.0
    %295 = vmatprep.subr.mxu0 0.0
    %296 = vmatpush1.msra.mxu0 0.0
    %297 = vmatprep.subr.mxu0 %v152
    %298 = vmatpush1.msra.mxu0 %v151
    %299 = vmatprep.subr.mxu0 %v144
    %300 = vmatpush1.msra.mxu0 %v143
    %301 = vmatprep.subr.mxu0 %v136
    %302 = vmatpush1.msra.mxu0 %v135
    %303 = vmatprep.subr.mxu0 %v128
    %304 = vmatpush1.msra.mxu0 %v127
    %305 = vmatprep.subr.mxu0 0.0
    %306 = vmatpush2.msra.mxu0 0.0
    %307 = vmatprep.subr.mxu0 0.0
    %308 = vmatpush2.msra.mxu0 0.0
    %309 = vmatprep.subr.mxu0 0.0
    %310 = vmatpush2.msra.mxu0 0.0
    %311 = vmatprep.subr.mxu0 0.0
    %312 = vmatpush2.msra.mxu0 0.0
    %313 = vmatprep.subr.mxu0 0.0
    %314 = vmatpush2.msra.mxu0 0.0
    %315 = vmatprep.subr.mxu0 0.0
    %316 = vmatpush2.msra.mxu0 0.0
    %317 = vmatprep.subr.mxu0 0.0
    %318 = vmatpush2.msra.mxu0 0.0
    %319 = vmatprep.subr.mxu0 0.0
    %320 = vmatpush2.msra.mxu0 0.0
    %321 = vmatprep.subr.mxu0 0.0
    %322 = vmatpush2.msra.mxu0 0.0
    %323 = vmatprep.subr.mxu0 0.0
    %324 = vmatpush2.msra.mxu0 0.0
    %325 = vmatprep.subr.mxu0 0.0
    %326 = vmatpush2.msra.mxu0 0.0
    %327 = vmatprep.subr.mxu0 0.0
    %328 = vmatpush2.msra.mxu0 0.0
    %329 = vmatprep.subr.mxu0 0.0
    %330 = vmatpush2.msra.mxu0 0.0
    %331 = vmatprep.subr.mxu0 0.0
    %332 = vmatpush2.msra.mxu0 0.0
    %333 = vmatprep.subr.mxu0 0.0
    %334 = vmatpush2.msra.mxu0 0.0
    %335 = vmatprep.subr.mxu0 0.0
    %336 = vmatpush2.msra.mxu0 0.0
    %337 = vmatprep.mubr.f32.mxu0 0.0
    %338 = vmatmul.mubr.f32.gmra.mxu0 %v200
    %v339 = vpop.f32.mrf.mxu0
    %v340 = vadd.f32 %v169, %v339
    %v341 = vpop.f32.mrf.mxu0
    %v342 = vadd.f32 %v173, %v341
    %343 = vdwg.mxu0
    %344 = vmatprep.subr.mxu0 0.0
    %345 = vmatpush1.msra.mxu0 0.0
    %346 = vmatprep.subr.mxu0 0.0
    %347 = vmatpush1.msra.mxu0 0.0
    %348 = vmatprep.subr.mxu0 0.0
    %349 = vmatpush1.msra.mxu0 0.0
    %350 = vmatprep.subr.mxu0 0.0
    %351 = vmatpush1.msra.mxu0 0.0
    %352 = vmatprep.subr.mxu0 0.0
    %353 = vmatpush1.msra.mxu0 0.0
    %354 = vmatprep.subr.mxu0 0.0
    %355 = vmatpush1.msra.mxu0 0.0
    %356 = vmatprep.subr.mxu0 0.0
    %357 = vmatpush1.msra.mxu0 0.0
    %358 = vmatprep.subr.mxu0 0.0
    %359 = vmatpush1.msra.mxu0 0.0
    %360 = vmatprep.subr.mxu0 0.0
    %361 = vmatpush1.msra.mxu0 0.0
    %362 = vmatprep.subr.mxu0 0.0
    %363 = vmatpush1.msra.mxu0 0.0
    %364 = vmatprep.subr.mxu0 0.0
    %365 = vmatpush1.msra.mxu0 0.0
    %366 = vmatprep.subr.mxu0 0.0
    %367 = vmatpush1.msra.mxu0 0.0
    %368 = vmatprep.subr.mxu0 %v154
    %369 = vmatpush1.msra.mxu0 %v153
    %370 = vmatprep.subr.mxu0 %v146
    %371 = vmatpush1.msra.mxu0 %v145
    %372 = vmatprep.subr.mxu0 %v138
    %373 = vmatpush1.msra.mxu0 %v137
    %374 = vmatprep.subr.mxu0 %v130
    %375 = vmatpush1.msra.mxu0 %v129
    %376 = vmatprep.subr.mxu0 0.0
    %377 = vmatpush2.msra.mxu0 0.0
    %378 = vmatprep.subr.mxu0 0.0
    %379 = vmatpush2.msra.mxu0 0.0
    %380 = vmatprep.subr.mxu0 0.0
    %381 = vmatpush2.msra.mxu0 0.0
    %382 = vmatprep.subr.mxu0 0.0
    %383 = vmatpush2.msra.mxu0 0.0
    %384 = vmatprep.subr.mxu0 0.0
    %385 = vmatpush2.msra.mxu0 0.0
    %386 = vmatprep.subr.mxu0 0.0
    %387 = vmatpush2.msra.mxu0 0.0
    %388 = vmatprep.subr.mxu0 0.0
    %389 = vmatpush2.msra.mxu0 0.0
    %390 = vmatprep.subr.mxu0 0.0
    %391 = vmatpush2.msra.mxu0 0.0
    %392 = vmatprep.subr.mxu0 0.0
    %393 = vmatpush2.msra.mxu0 0.0
    %394 = vmatprep.subr.mxu0 0.0
    %395 = vmatpush2.msra.mxu0 0.0
    %396 = vmatprep.subr.mxu0 0.0
    %397 = vmatpush2.msra.mxu0 0.0
    %398 = vmatprep.subr.mxu0 0.0
    %399 = vmatpush2.msra.mxu0 0.0
    %400 = vmatprep.subr.mxu0 0.0
    %401 = vmatpush2.msra.mxu0 0.0
    %402 = vmatprep.subr.mxu0 0.0
    %403 = vmatpush2.msra.mxu0 0.0
    %404 = vmatprep.subr.mxu0 0.0
    %405 = vmatpush2.msra.mxu0 0.0
    %406 = vmatprep.subr.mxu0 0.0
    %407 = vmatpush2.msra.mxu0 0.0
    %408 = vmatprep.mubr.f32.mxu0 0.0
    %409 = vmatmul.mubr.f32.gmra.mxu0 %v200
    %v410 = vpop.f32.mrf.mxu0
    %v411 = vadd.f32 %v177, %v410
    %v412 = vpop.f32.mrf.mxu0
    %v413 = vadd.f32 %v181, %v412
    %414 = vdwg.mxu0
    %415 = vmatprep.subr.mxu0 0.0
    %416 = vmatpush1.msra.mxu0 0.0
    %417 = vmatprep.subr.mxu0 0.0
    %418 = vmatpush1.msra.mxu0 0.0
    %419 = vmatprep.subr.mxu0 0.0
    %420 = vmatpush1.msra.mxu0 0.0
    %421 = vmatprep.subr.mxu0 0.0
    %422 = vmatpush1.msra.mxu0 0.0
    %423 = vmatprep.subr.mxu0 0.0
    %424 = vmatpush1.msra.mxu0 0.0
    %425 = vmatprep.subr.mxu0 0.0
    %426 = vmatpush1.msra.mxu0 0.0
    %427 = vmatprep.subr.mxu0 0.0
    %428 = vmatpush1.msra.mxu0 0.0
    %429 = vmatprep.subr.mxu0 0.0
    %430 = vmatpush1.msra.mxu0 0.0
    %431 = vmatprep.subr.mxu0 0.0
    %432 = vmatpush1.msra.mxu0 0.0
    %433 = vmatprep.subr.mxu0 0.0
    %434 = vmatpush1.msra.mxu0 0.0
    %435 = vmatprep.subr.mxu0 0.0
    %436 = vmatpush1.msra.mxu0 0.0
    %437 = vmatprep.subr.mxu0 0.0
    %438 = vmatpush1.msra.mxu0 0.0
    %439 = vmatprep.subr.mxu0 %v156
    %440 = vmatpush1.msra.mxu0 %v155
    %441 = vmatprep.subr.mxu0 %v148
    %442 = vmatpush1.msra.mxu0 %v147
    %443 = vmatprep.subr.mxu0 %v140
    %444 = vmatpush1.msra.mxu0 %v139
    %445 = vmatprep.subr.mxu0 %v132
    %446 = vmatpush1.msra.mxu0 %v131
    %447 = vmatprep.subr.mxu0 0.0
    %448 = vmatpush2.msra.mxu0 0.0
    %449 = vmatprep.subr.mxu0 0.0
    %450 = vmatpush2.msra.mxu0 0.0
    %451 = vmatprep.subr.mxu0 0.0
    %452 = vmatpush2.msra.mxu0 0.0
    %453 = vmatprep.subr.mxu0 0.0
    %454 = vmatpush2.msra.mxu0 0.0
    %455 = vmatprep.subr.mxu0 0.0
    %456 = vmatpush2.msra.mxu0 0.0
    %457 = vmatprep.subr.mxu0 0.0
    %458 = vmatpush2.msra.mxu0 0.0
    %459 = vmatprep.subr.mxu0 0.0
    %460 = vmatpush2.msra.mxu0 0.0
    %461 = vmatprep.subr.mxu0 0.0
    %462 = vmatpush2.msra.mxu0 0.0
    %463 = vmatprep.subr.mxu0 0.0
    %464 = vmatpush2.msra.mxu0 0.0
    %465 = vmatprep.subr.mxu0 0.0
    %466 = vmatpush2.msra.mxu0 0.0
    %467 = vmatprep.subr.mxu0 0.0
    %468 = vmatpush2.msra.mxu0 0.0
    %469 = vmatprep.subr.mxu0 0.0
    %470 = vmatpush2.msra.mxu0 0.0
    %471 = vmatprep.subr.mxu0 0.0
    %472 = vmatpush2.msra.mxu0 0.0
    %473 = vmatprep.subr.mxu0 0.0
    %474 = vmatpush2.msra.mxu0 0.0
    %475 = vmatprep.subr.mxu0 0.0
    %476 = vmatpush2.msra.mxu0 0.0
    %477 = vmatprep.subr.mxu0 0.0
    %478 = vmatpush2.msra.mxu0 0.0
    %479 = vmatprep.mubr.f32.mxu0 0.0
    %480 = vmatmul.mubr.f32.gmra.mxu0 %v200
    %v481 = vpop.f32.mrf.mxu0
    %v482 = vadd.f32 %v185, %v481
    %v483 = vpop.f32.mrf.mxu0
    %v484 = vadd.f32 %v189, %v483
    %485 = vdwg.mxu0
    %v486 = vmax.f32 %v269, 0.0
    %v487 = vmax.f32 %v271, 0.0
    %v488 = vmax.f32 %v340, 0.0
    %v489 = vmax.f32 %v342, 0.0
    %v490 = vmax.f32 %v411, 0.0
    %v491 = vmax.f32 %v413, 0.0
    %v492 = vmax.f32 %v482, 0.0
    %v493 = vmax.f32 %v484, 0.0
    %v494 = vld [vmem:[#allocation8] sm:$0xff]
    %v495 = vld [vmem:[#allocation8 + $0x8] sm:$0xff]
    %v496 = vld [vmem:[#allocation8 + $0x10] sm:$0xff]
    %v497 = vld [vmem:[#allocation8 + $0x18] sm:$0xff]
    %v498 = vld [vmem:[#allocation8 + $0x20] sm:$0xff]
    %v499 = vld [vmem:[#allocation8 + $0x28] sm:$0xff]
    %v500 = vld [vmem:[#allocation8 + $0x30] sm:$0xff]
    %v501 = vld [vmem:[#allocation8 + $0x38] sm:$0xff]
    %v502 = vld [vmem:[#allocation8 + $0x40] sm:$0xff]
    %v503 = vld [vmem:[#allocation8 + $0x48] sm:$0xff]
    %v504 = vld [vmem:[#allocation8 + $0x50] sm:$0xff]
    %v505 = vld [vmem:[#allocation8 + $0x58] sm:$0xff]
    %v506 = vld [vmem:[#allocation8 + $0x60] sm:$0xff]
    %v507 = vld [vmem:[#allocation8 + $0x68] sm:$0xff]
    %v508 = vld [vmem:[#allocation8 + $0x70] sm:$0xff]
    %v509 = vld [vmem:[#allocation8 + $0x78] sm:$0xff]
    %v510 = vld [vmem:[#allocation8 + $0x80] sm:$0xff]
    %v511 = vld [vmem:[#allocation8 + $0x88] sm:$0xff]
    %v512 = vld [vmem:[#allocation8 + $0x90] sm:$0xff]
    %v513 = vld [vmem:[#allocation8 + $0x98] sm:$0xff]
    %v514 = vld [vmem:[#allocation8 + $0xa0] sm:$0xff]
    %v515 = vld [vmem:[#allocation8 + $0xa8] sm:$0xff]
    %v516 = vld [vmem:[#allocation8 + $0xb0] sm:$0xff]
    %v517 = vld [vmem:[#allocation8 + $0xb8] sm:$0xff]
    %v518 = vld [vmem:[#allocation8 + $0xc0] sm:$0xff]
    %v519 = vld [vmem:[#allocation8 + $0xc8] sm:$0xff]
    %v520 = vld [vmem:[#allocation8 + $0xd0] sm:$0xff]
    %v521 = vld [vmem:[#allocation8 + $0xd8] sm:$0xff]
    %v522 = vld [vmem:[#allocation8 + $0xe0] sm:$0xff]
    %v523 = vld [vmem:[#allocation8 + $0xe8] sm:$0xff]
    %v524 = vld [vmem:[#allocation8 + $0xf0] sm:$0xff]
    %v525 = vld [vmem:[#allocation8 + $0xf8] sm:$0xff]
    %v526 = vld [vmem:[#allocation8 + $0x100] sm:$0xff]
    %v527 = vld [vmem:[#allocation8 + $0x108] sm:$0xff]
    %v528 = vld [vmem:[#allocation8 + $0x110] sm:$0xff]
    %v529 = vld [vmem:[#allocation8 + $0x118] sm:$0xff]
    %v530 = vld [vmem:[#allocation8 + $0x120] sm:$0xff]
    %v531 = vld [vmem:[#allocation8 + $0x128] sm:$0xff]
    %v532 = vld [vmem:[#allocation8 + $0x130] sm:$0xff]
    %v533 = vld [vmem:[#allocation8 + $0x138] sm:$0xff]
    %v534 = vld [vmem:[#allocation8 + $0x140] sm:$0xff]
    %v535 = vld [vmem:[#allocation8 + $0x148] sm:$0xff]
    %v536 = vld [vmem:[#allocation8 + $0x150] sm:$0xff]
    %v537 = vld [vmem:[#allocation8 + $0x158] sm:$0xff]
    %v538 = vld [vmem:[#allocation8 + $0x160] sm:$0xff]
    %v539 = vld [vmem:[#allocation8 + $0x168] sm:$0xff]
    %v540 = vld [vmem:[#allocation8 + $0x170] sm:$0xff]
    %v541 = vld [vmem:[#allocation8 + $0x178] sm:$0xff]
    %v542 = vld [vmem:[#allocation8 + $0x180] sm:$0xff]
    %v543 = vld [vmem:[#allocation8 + $0x188] sm:$0xff]
    %v544 = vld [vmem:[#allocation8 + $0x190] sm:$0xff]
    %v545 = vld [vmem:[#allocation8 + $0x198] sm:$0xff]
    %v546 = vld [vmem:[#allocation8 + $0x1a0] sm:$0xff]
    %v547 = vld [vmem:[#allocation8 + $0x1a8] sm:$0xff]
    %v548 = vld [vmem:[#allocation8 + $0x1b0] sm:$0xff]
    %v549 = vld [vmem:[#allocation8 + $0x1b8] sm:$0xff]
    %v550 = vld [vmem:[#allocation8 + $0x1c0] sm:$0xff]
    %v551 = vld [vmem:[#allocation8 + $0x1c8] sm:$0xff]
    %v552 = vld [vmem:[#allocation8 + $0x1d0] sm:$0xff]
    %v553 = vld [vmem:[#allocation8 + $0x1d8] sm:$0xff]
    %v554 = vld [vmem:[#allocation8 + $0x1e0] sm:$0xff]
    %v555 = vld [vmem:[#allocation8 + $0x1e8] sm:$0xff]
    %v556 = vld [vmem:[#allocation8 + $0x1f0] sm:$0xff]
    %v557 = vld [vmem:[#allocation8 + $0x1f8] sm:$0xff]
    %v558 = vld [vmem:[#allocation8 + $0x200] sm:$0xff]
    %v559 = vld [vmem:[#allocation8 + $0x208] sm:$0xff]
    %v560 = vld [vmem:[#allocation8 + $0x210] sm:$0xff]
    %v561 = vld [vmem:[#allocation8 + $0x218] sm:$0xff]
    %v562 = vld [vmem:[#allocation8 + $0x220] sm:$0xff]
    %v563 = vld [vmem:[#allocation8 + $0x228] sm:$0xff]
    %v564 = vld [vmem:[#allocation8 + $0x230] sm:$0xff]
    %v565 = vld [vmem:[#allocation8 + $0x238] sm:$0xff]
    %v566 = vld [vmem:[#allocation8 + $0x240] sm:$0xff]
    %v567 = vld [vmem:[#allocation8 + $0x248] sm:$0xff]
    %v568 = vld [vmem:[#allocation8 + $0x250] sm:$0xff]
    %v569 = vld [vmem:[#allocation8 + $0x258] sm:$0xff]
    %v570 = vld [vmem:[#allocation8 + $0x260] sm:$0xff]
    %v571 = vld [vmem:[#allocation8 + $0x268] sm:$0xff]
    %v572 = vld [vmem:[#allocation8 + $0x270] sm:$0xff]
    %v573 = vld [vmem:[#allocation8 + $0x278] sm:$0xff]
    %v574 = vld [vmem:[#allocation8 + $0x280] sm:$0xff]
    %v575 = vld [vmem:[#allocation8 + $0x288] sm:$0xff]
    %v576 = vld [vmem:[#allocation8 + $0x290] sm:$0xff]
    %v577 = vld [vmem:[#allocation8 + $0x298] sm:$0xff]
    %v578 = vld [vmem:[#allocation8 + $0x2a0] sm:$0xff]
    %v579 = vld [vmem:[#allocation8 + $0x2a8] sm:$0xff]
    %v580 = vld [vmem:[#allocation8 + $0x2b0] sm:$0xff]
    %v581 = vld [vmem:[#allocation8 + $0x2b8] sm:$0xff]
    %v582 = vld [vmem:[#allocation8 + $0x2c0] sm:$0xff]
    %v583 = vld [vmem:[#allocation8 + $0x2c8] sm:$0xff]
    %v584 = vld [vmem:[#allocation8 + $0x2d0] sm:$0xff]
    %v585 = vld [vmem:[#allocation8 + $0x2d8] sm:$0xff]
    %v586 = vld [vmem:[#allocation8 + $0x2e0] sm:$0xff]
    %v587 = vld [vmem:[#allocation8 + $0x2e8] sm:$0xff]
    %v588 = vld [vmem:[#allocation8 + $0x2f0] sm:$0xff]
    %v589 = vld [vmem:[#allocation8 + $0x2f8] sm:$0xff]
    %v590 = vld [vmem:[#allocation8 + $0x300] sm:$0xff]
    %v591 = vld [vmem:[#allocation8 + $0x308] sm:$0xff]
    %v592 = vld [vmem:[#allocation8 + $0x310] sm:$0xff]
    %v593 = vld [vmem:[#allocation8 + $0x318] sm:$0xff]
    %v594 = vld [vmem:[#allocation8 + $0x320] sm:$0xff]
    %v595 = vld [vmem:[#allocation8 + $0x328] sm:$0xff]
    %v596 = vld [vmem:[#allocation8 + $0x330] sm:$0xff]
    %v597 = vld [vmem:[#allocation8 + $0x338] sm:$0xff]
    %v598 = vld [vmem:[#allocation8 + $0x340] sm:$0xff]
    %v599 = vld [vmem:[#allocation8 + $0x348] sm:$0xff]
    %v600 = vld [vmem:[#allocation8 + $0x350] sm:$0xff]
    %v601 = vld [vmem:[#allocation8 + $0x358] sm:$0xff]
    %v602 = vld [vmem:[#allocation8 + $0x360] sm:$0xff]
    %v603 = vld [vmem:[#allocation8 + $0x368] sm:$0xff]
    %v604 = vld [vmem:[#allocation8 + $0x370] sm:$0xff]
    %v605 = vld [vmem:[#allocation8 + $0x378] sm:$0xff]
    %v606 = vld [vmem:[#allocation8 + $0x380] sm:$0xff]
    %v607 = vld [vmem:[#allocation8 + $0x388] sm:$0xff]
    %v608 = vld [vmem:[#allocation8 + $0x390] sm:$0xff]
    %v609 = vld [vmem:[#allocation8 + $0x398] sm:$0xff]
    %v610 = vld [vmem:[#allocation8 + $0x3a0] sm:$0xff]
    %v611 = vld [vmem:[#allocation8 + $0x3a8] sm:$0xff]
    %v612 = vld [vmem:[#allocation8 + $0x3b0] sm:$0xff]
    %v613 = vld [vmem:[#allocation8 + $0x3b8] sm:$0xff]
    %v614 = vld [vmem:[#allocation8 + $0x3c0] sm:$0xff]
    %v615 = vld [vmem:[#allocation8 + $0x3c8] sm:$0xff]
    %v616 = vld [vmem:[#allocation8 + $0x3d0] sm:$0xff]
    %v617 = vld [vmem:[#allocation8 + $0x3d8] sm:$0xff]
    %v618 = vld [vmem:[#allocation8 + $0x3e0] sm:$0xff]
    %v619 = vld [vmem:[#allocation8 + $0x3e8] sm:$0xff]
    %v620 = vld [vmem:[#allocation8 + $0x3f0] sm:$0xff]
    %v621 = vld [vmem:[#allocation8 + $0x3f8] sm:$0xff]
    %v622 = vld [vmem:[#allocation8 + $0x400] sm:$0xff]
    %v623 = vld [vmem:[#allocation8 + $0x408] sm:$0xff]
    %v624 = vld [vmem:[#allocation8 + $0x410] sm:$0xff]
    %v625 = vld [vmem:[#allocation8 + $0x418] sm:$0xff]
    %v626 = vld [vmem:[#allocation8 + $0x420] sm:$0xff]
    %v627 = vld [vmem:[#allocation8 + $0x428] sm:$0xff]
    %v628 = vld [vmem:[#allocation8 + $0x430] sm:$0xff]
    %v629 = vld [vmem:[#allocation8 + $0x438] sm:$0xff]
    %v630 = vld [vmem:[#allocation8 + $0x440] sm:$0xff]
    %v631 = vld [vmem:[#allocation8 + $0x448] sm:$0xff]
    %v632 = vld [vmem:[#allocation8 + $0x450] sm:$0xff]
    %v633 = vld [vmem:[#allocation8 + $0x458] sm:$0xff]
    %v634 = vld [vmem:[#allocation8 + $0x460] sm:$0xff]
    %v635 = vld [vmem:[#allocation8 + $0x468] sm:$0xff]
    %v636 = vld [vmem:[#allocation8 + $0x470] sm:$0xff]
    %v637 = vld [vmem:[#allocation8 + $0x478] sm:$0xff]
    %v638 = vld [vmem:[#allocation8 + $0x480] sm:$0xff]
    %v639 = vld [vmem:[#allocation8 + $0x488] sm:$0xff]
    %v640 = vld [vmem:[#allocation8 + $0x490] sm:$0xff]
    %v641 = vld [vmem:[#allocation8 + $0x498] sm:$0xff]
    %v642 = vld [vmem:[#allocation8 + $0x4a0] sm:$0xff]
    %v643 = vld [vmem:[#allocation8 + $0x4a8] sm:$0xff]
    %v644 = vld [vmem:[#allocation8 + $0x4b0] sm:$0xff]
    %v645 = vld [vmem:[#allocation8 + $0x4b8] sm:$0xff]
    %v646 = vld [vmem:[#allocation8 + $0x4c0] sm:$0xff]
    %v647 = vld [vmem:[#allocation8 + $0x4c8] sm:$0xff]
    %v648 = vld [vmem:[#allocation8 + $0x4d0] sm:$0xff]
    %v649 = vld [vmem:[#allocation8 + $0x4d8] sm:$0xff]
    %v650 = vld [vmem:[#allocation8 + $0x4e0] sm:$0xff]
    %v651 = vld [vmem:[#allocation8 + $0x4e8] sm:$0xff]
    %v652 = vld [vmem:[#allocation8 + $0x4f0] sm:$0xff]
    %v653 = vld [vmem:[#allocation8 + $0x4f8] sm:$0xff]
    %v654 = vld [vmem:[#allocation8 + $0x500] sm:$0xff]
    %v655 = vld [vmem:[#allocation8 + $0x508] sm:$0xff]
    %v656 = vld [vmem:[#allocation8 + $0x510] sm:$0xff]
    %v657 = vld [vmem:[#allocation8 + $0x518] sm:$0xff]
    %v658 = vld [vmem:[#allocation8 + $0x520] sm:$0xff]
    %v659 = vld [vmem:[#allocation8 + $0x528] sm:$0xff]
    %v660 = vld [vmem:[#allocation8 + $0x530] sm:$0xff]
    %v661 = vld [vmem:[#allocation8 + $0x538] sm:$0xff]
    %v662 = vld [vmem:[#allocation8 + $0x540] sm:$0xff]
    %v663 = vld [vmem:[#allocation8 + $0x548] sm:$0xff]
    %v664 = vld [vmem:[#allocation8 + $0x550] sm:$0xff]
    %v665 = vld [vmem:[#allocation8 + $0x558] sm:$0xff]
    %v666 = vld [vmem:[#allocation8 + $0x560] sm:$0xff]
    %v667 = vld [vmem:[#allocation8 + $0x568] sm:$0xff]
    %v668 = vld [vmem:[#allocation8 + $0x570] sm:$0xff]
    %v669 = vld [vmem:[#allocation8 + $0x578] sm:$0xff]
    %v670 = vld [vmem:[#allocation8 + $0x580] sm:$0xff]
    %v671 = vld [vmem:[#allocation8 + $0x588] sm:$0xff]
    %v672 = vld [vmem:[#allocation8 + $0x590] sm:$0xff]
    %v673 = vld [vmem:[#allocation8 + $0x598] sm:$0xff]
    %v674 = vld [vmem:[#allocation8 + $0x5a0] sm:$0xff]
    %v675 = vld [vmem:[#allocation8 + $0x5a8] sm:$0xff]
    %v676 = vld [vmem:[#allocation8 + $0x5b0] sm:$0xff]
    %v677 = vld [vmem:[#allocation8 + $0x5b8] sm:$0xff]
    %v678 = vld [vmem:[#allocation8 + $0x5c0] sm:$0xff]
    %v679 = vld [vmem:[#allocation8 + $0x5c8] sm:$0xff]
    %v680 = vld [vmem:[#allocation8 + $0x5d0] sm:$0xff]
    %v681 = vld [vmem:[#allocation8 + $0x5d8] sm:$0xff]
    %v682 = vld [vmem:[#allocation8 + $0x5e0] sm:$0xff]
    %v683 = vld [vmem:[#allocation8 + $0x5e8] sm:$0xff]
    %v684 = vld [vmem:[#allocation8 + $0x5f0] sm:$0xff]
    %v685 = vld [vmem:[#allocation8 + $0x5f8] sm:$0xff]
    %v686 = vld [vmem:[#allocation8 + $0x600] sm:$0xff]
    %v687 = vld [vmem:[#allocation8 + $0x608] sm:$0xff]
    %v688 = vld [vmem:[#allocation8 + $0x610] sm:$0xff]
    %v689 = vld [vmem:[#allocation8 + $0x618] sm:$0xff]
    %v690 = vld [vmem:[#allocation8 + $0x620] sm:$0xff]
    %v691 = vld [vmem:[#allocation8 + $0x628] sm:$0xff]
    %v692 = vld [vmem:[#allocation8 + $0x630] sm:$0xff]
    %v693 = vld [vmem:[#allocation8 + $0x638] sm:$0xff]
    %v694 = vld [vmem:[#allocation8 + $0x640] sm:$0xff]
    %v695 = vld [vmem:[#allocation8 + $0x648] sm:$0xff]
    %v696 = vld [vmem:[#allocation8 + $0x650] sm:$0xff]
    %v697 = vld [vmem:[#allocation8 + $0x658] sm:$0xff]
    %v698 = vld [vmem:[#allocation8 + $0x660] sm:$0xff]
    %v699 = vld [vmem:[#allocation8 + $0x668] sm:$0xff]
    %v700 = vld [vmem:[#allocation8 + $0x670] sm:$0xff]
    %v701 = vld [vmem:[#allocation8 + $0x678] sm:$0xff]
    %v702 = vld [vmem:[#allocation8 + $0x680] sm:$0xff]
    %v703 = vld [vmem:[#allocation8 + $0x688] sm:$0xff]
    %v704 = vld [vmem:[#allocation8 + $0x690] sm:$0xff]
    %v705 = vld [vmem:[#allocation8 + $0x698] sm:$0xff]
    %v706 = vld [vmem:[#allocation8 + $0x6a0] sm:$0xff]
    %v707 = vld [vmem:[#allocation8 + $0x6a8] sm:$0xff]
    %v708 = vld [vmem:[#allocation8 + $0x6b0] sm:$0xff]
    %v709 = vld [vmem:[#allocation8 + $0x6b8] sm:$0xff]
    %v710 = vld [vmem:[#allocation8 + $0x6c0] sm:$0xff]
    %v711 = vld [vmem:[#allocation8 + $0x6c8] sm:$0xff]
    %v712 = vld [vmem:[#allocation8 + $0x6d0] sm:$0xff]
    %v713 = vld [vmem:[#allocation8 + $0x6d8] sm:$0xff]
    %v714 = vld [vmem:[#allocation8 + $0x6e0] sm:$0xff]
    %v715 = vld [vmem:[#allocation8 + $0x6e8] sm:$0xff]
    %v716 = vld [vmem:[#allocation8 + $0x6f0] sm:$0xff]
    %v717 = vld [vmem:[#allocation8 + $0x6f8] sm:$0xff]
    %v718 = vld [vmem:[#allocation8 + $0x700] sm:$0xff]
    %v719 = vld [vmem:[#allocation8 + $0x708] sm:$0xff]
    %v720 = vld [vmem:[#allocation8 + $0x710] sm:$0xff]
    %v721 = vld [vmem:[#allocation8 + $0x718] sm:$0xff]
    %v722 = vld [vmem:[#allocation8 + $0x720] sm:$0xff]
    %v723 = vld [vmem:[#allocation8 + $0x728] sm:$0xff]
    %v724 = vld [vmem:[#allocation8 + $0x730] sm:$0xff]
    %v725 = vld [vmem:[#allocation8 + $0x738] sm:$0xff]
    %v726 = vld [vmem:[#allocation8 + $0x740] sm:$0xff]
    %v727 = vld [vmem:[#allocation8 + $0x748] sm:$0xff]
    %v728 = vld [vmem:[#allocation8 + $0x750] sm:$0xff]
    %v729 = vld [vmem:[#allocation8 + $0x758] sm:$0xff]
    %v730 = vld [vmem:[#allocation8 + $0x760] sm:$0xff]
    %v731 = vld [vmem:[#allocation8 + $0x768] sm:$0xff]
    %v732 = vld [vmem:[#allocation8 + $0x770] sm:$0xff]
    %v733 = vld [vmem:[#allocation8 + $0x778] sm:$0xff]
    %v734 = vld [vmem:[#allocation8 + $0x780] sm:$0xff]
    %v735 = vld [vmem:[#allocation8 + $0x788] sm:$0xff]
    %v736 = vld [vmem:[#allocation8 + $0x790] sm:$0xff]
    %v737 = vld [vmem:[#allocation8 + $0x798] sm:$0xff]
    %v738 = vld [vmem:[#allocation8 + $0x7a0] sm:$0xff]
    %v739 = vld [vmem:[#allocation8 + $0x7a8] sm:$0xff]
    %v740 = vld [vmem:[#allocation8 + $0x7b0] sm:$0xff]
    %v741 = vld [vmem:[#allocation8 + $0x7b8] sm:$0xff]
    %v742 = vld [vmem:[#allocation8 + $0x7c0] sm:$0xff]
    %v743 = vld [vmem:[#allocation8 + $0x7c8] sm:$0xff]
    %v744 = vld [vmem:[#allocation8 + $0x7d0] sm:$0xff]
    %v745 = vld [vmem:[#allocation8 + $0x7d8] sm:$0xff]
    %v746 = vld [vmem:[#allocation8 + $0x7e0] sm:$0xff]
    %v747 = vld [vmem:[#allocation8 + $0x7e8] sm:$0xff]
    %v748 = vld [vmem:[#allocation8 + $0x7f0] sm:$0xff]
    %v749 = vld [vmem:[#allocation8 + $0x7f8] sm:$0xff]
    %v750 = vld [vmem:[#allocation8 + $0x800] sm:$0xff]
    %v751 = vld [vmem:[#allocation8 + $0x808] sm:$0xff]
    %v752 = vld [vmem:[#allocation8 + $0x810] sm:$0xff]
    %v753 = vld [vmem:[#allocation8 + $0x818] sm:$0xff]
    %v754 = vld [vmem:[#allocation8 + $0x820] sm:$0xff]
    %v755 = vld [vmem:[#allocation8 + $0x828] sm:$0xff]
    %v756 = vld [vmem:[#allocation8 + $0x830] sm:$0xff]
    %v757 = vld [vmem:[#allocation8 + $0x838] sm:$0xff]
    %v758 = vld [vmem:[#allocation8 + $0x840] sm:$0xff]
    %v759 = vld [vmem:[#allocation8 + $0x848] sm:$0xff]
    %v760 = vld [vmem:[#allocation8 + $0x850] sm:$0xff]
    %v761 = vld [vmem:[#allocation8 + $0x858] sm:$0xff]
    %v762 = vld [vmem:[#allocation8 + $0x860] sm:$0xff]
    %v763 = vld [vmem:[#allocation8 + $0x868] sm:$0xff]
    %v764 = vld [vmem:[#allocation8 + $0x870] sm:$0xff]
    %v765 = vld [vmem:[#allocation8 + $0x878] sm:$0xff]
    %v766 = vld [vmem:[#allocation8 + $0x880] sm:$0xff]
    %v767 = vld [vmem:[#allocation8 + $0x888] sm:$0xff]
    %v768 = vld [vmem:[#allocation8 + $0x890] sm:$0xff]
    %v769 = vld [vmem:[#allocation8 + $0x898] sm:$0xff]
    %v770 = vld [vmem:[#allocation8 + $0x8a0] sm:$0xff]
    %v771 = vld [vmem:[#allocation8 + $0x8a8] sm:$0xff]
    %v772 = vld [vmem:[#allocation8 + $0x8b0] sm:$0xff]
    %v773 = vld [vmem:[#allocation8 + $0x8b8] sm:$0xff]
    %v774 = vld [vmem:[#allocation8 + $0x8c0] sm:$0xff]
    %v775 = vld [vmem:[#allocation8 + $0x8c8] sm:$0xff]
    %v776 = vld [vmem:[#allocation8 + $0x8d0] sm:$0xff]
    %v777 = vld [vmem:[#allocation8 + $0x8d8] sm:$0xff]
    %v778 = vld [vmem:[#allocation8 + $0x8e0] sm:$0xff]
    %v779 = vld [vmem:[#allocation8 + $0x8e8] sm:$0xff]
    %v780 = vld [vmem:[#allocation8 + $0x8f0] sm:$0xff]
    %v781 = vld [vmem:[#allocation8 + $0x8f8] sm:$0xff]
    %v782 = vld [vmem:[#allocation8 + $0x900] sm:$0xff]
    %v783 = vld [vmem:[#allocation8 + $0x908] sm:$0xff]
    %v784 = vld [vmem:[#allocation8 + $0x910] sm:$0xff]
    %v785 = vld [vmem:[#allocation8 + $0x918] sm:$0xff]
    %v786 = vld [vmem:[#allocation8 + $0x920] sm:$0xff]
    %v787 = vld [vmem:[#allocation8 + $0x928] sm:$0xff]
    %v788 = vld [vmem:[#allocation8 + $0x930] sm:$0xff]
    %v789 = vld [vmem:[#allocation8 + $0x938] sm:$0xff]
    %v790 = vld [vmem:[#allocation8 + $0x940] sm:$0xff]
    %v791 = vld [vmem:[#allocation8 + $0x948] sm:$0xff]
    %v792 = vld [vmem:[#allocation8 + $0x950] sm:$0xff]
    %v793 = vld [vmem:[#allocation8 + $0x958] sm:$0xff]
    %v794 = vld [vmem:[#allocation8 + $0x960] sm:$0xff]
    %v795 = vld [vmem:[#allocation8 + $0x968] sm:$0xff]
    %v796 = vld [vmem:[#allocation8 + $0x970] sm:$0xff]
    %v797 = vld [vmem:[#allocation8 + $0x978] sm:$0xff]
    %v798 = vld [vmem:[#allocation8 + $0x980] sm:$0xff]
    %v799 = vld [vmem:[#allocation8 + $0x988] sm:$0xff]
    %v800 = vld [vmem:[#allocation8 + $0x990] sm:$0xff]
    %v801 = vld [vmem:[#allocation8 + $0x998] sm:$0xff]
    %v802 = vld [vmem:[#allocation8 + $0x9a0] sm:$0xff]
    %v803 = vld [vmem:[#allocation8 + $0x9a8] sm:$0xff]
    %v804 = vld [vmem:[#allocation8 + $0x9b0] sm:$0xff]
    %v805 = vld [vmem:[#allocation8 + $0x9b8] sm:$0xff]
    %v806 = vld [vmem:[#allocation8 + $0x9c0] sm:$0xff]
    %v807 = vld [vmem:[#allocation8 + $0x9c8] sm:$0xff]
    %v808 = vld [vmem:[#allocation8 + $0x9d0] sm:$0xff]
    %v809 = vld [vmem:[#allocation8 + $0x9d8] sm:$0xff]
    %v810 = vld [vmem:[#allocation8 + $0x9e0] sm:$0xff]
    %v811 = vld [vmem:[#allocation8 + $0x9e8] sm:$0xff]
    %v812 = vld [vmem:[#allocation8 + $0x9f0] sm:$0xff]
    %v813 = vld [vmem:[#allocation8 + $0x9f8] sm:$0xff]
    %v814 = vld [vmem:[#allocation8 + $0xa00] sm:$0xff]
    %v815 = vld [vmem:[#allocation8 + $0xa08] sm:$0xff]
    %v816 = vld [vmem:[#allocation8 + $0xa10] sm:$0xff]
    %v817 = vld [vmem:[#allocation8 + $0xa18] sm:$0xff]
    %v818 = vld [vmem:[#allocation8 + $0xa20] sm:$0xff]
    %v819 = vld [vmem:[#allocation8 + $0xa28] sm:$0xff]
    %v820 = vld [vmem:[#allocation8 + $0xa30] sm:$0xff]
    %v821 = vld [vmem:[#allocation8 + $0xa38] sm:$0xff]
    %v822 = vld [vmem:[#allocation8 + $0xa40] sm:$0xff]
    %v823 = vld [vmem:[#allocation8 + $0xa48] sm:$0xff]
    %v824 = vld [vmem:[#allocation8 + $0xa50] sm:$0xff]
    %v825 = vld [vmem:[#allocation8 + $0xa58] sm:$0xff]
    %v826 = vld [vmem:[#allocation8 + $0xa60] sm:$0xff]
    %v827 = vld [vmem:[#allocation8 + $0xa68] sm:$0xff]
    %v828 = vld [vmem:[#allocation8 + $0xa70] sm:$0xff]
    %v829 = vld [vmem:[#allocation8 + $0xa78] sm:$0xff]
    %v830 = vld [vmem:[#allocation8 + $0xa80] sm:$0xff]
    %v831 = vld [vmem:[#allocation8 + $0xa88] sm:$0xff]
    %v832 = vld [vmem:[#allocation8 + $0xa90] sm:$0xff]
    %v833 = vld [vmem:[#allocation8 + $0xa98] sm:$0xff]
    %v834 = vld [vmem:[#allocation8 + $0xaa0] sm:$0xff]
    %v835 = vld [vmem:[#allocation8 + $0xaa8] sm:$0xff]
    %v836 = vld [vmem:[#allocation8 + $0xab0] sm:$0xff]
    %v837 = vld [vmem:[#allocation8 + $0xab8] sm:$0xff]
    %v838 = vld [vmem:[#allocation8 + $0xac0] sm:$0xff]
    %v839 = vld [vmem:[#allocation8 + $0xac8] sm:$0xff]
    %v840 = vld [vmem:[#allocation8 + $0xad0] sm:$0xff]
    %v841 = vld [vmem:[#allocation8 + $0xad8] sm:$0xff]
    %v842 = vld [vmem:[#allocation8 + $0xae0] sm:$0xff]
    %v843 = vld [vmem:[#allocation8 + $0xae8] sm:$0xff]
    %v844 = vld [vmem:[#allocation8 + $0xaf0] sm:$0xff]
    %v845 = vld [vmem:[#allocation8 + $0xaf8] sm:$0xff]
    %v846 = vld [vmem:[#allocation8 + $0xb00] sm:$0xff]
    %v847 = vld [vmem:[#allocation8 + $0xb08] sm:$0xff]
    %v848 = vld [vmem:[#allocation8 + $0xb10] sm:$0xff]
    %v849 = vld [vmem:[#allocation8 + $0xb18] sm:$0xff]
    %v850 = vld [vmem:[#allocation8 + $0xb20] sm:$0xff]
    %v851 = vld [vmem:[#allocation8 + $0xb28] sm:$0xff]
    %v852 = vld [vmem:[#allocation8 + $0xb30] sm:$0xff]
    %v853 = vld [vmem:[#allocation8 + $0xb38] sm:$0xff]
    %v854 = vld [vmem:[#allocation8 + $0xb40] sm:$0xff]
    %v855 = vld [vmem:[#allocation8 + $0xb48] sm:$0xff]
    %v856 = vld [vmem:[#allocation8 + $0xb50] sm:$0xff]
    %v857 = vld [vmem:[#allocation8 + $0xb58] sm:$0xff]
    %v858 = vld [vmem:[#allocation8 + $0xb60] sm:$0xff]
    %v859 = vld [vmem:[#allocation8 + $0xb68] sm:$0xff]
    %v860 = vld [vmem:[#allocation8 + $0xb70] sm:$0xff]
    %v861 = vld [vmem:[#allocation8 + $0xb78] sm:$0xff]
    %v862 = vld [vmem:[#allocation8 + $0xb80] sm:$0xff]
    %v863 = vld [vmem:[#allocation8 + $0xb88] sm:$0xff]
    %v864 = vld [vmem:[#allocation8 + $0xb90] sm:$0xff]
    %v865 = vld [vmem:[#allocation8 + $0xb98] sm:$0xff]
    %v866 = vld [vmem:[#allocation8 + $0xba0] sm:$0xff]
    %v867 = vld [vmem:[#allocation8 + $0xba8] sm:$0xff]
    %v868 = vld [vmem:[#allocation8 + $0xbb0] sm:$0xff]
    %v869 = vld [vmem:[#allocation8 + $0xbb8] sm:$0xff]
    %v870 = vld [vmem:[#allocation8 + $0xbc0] sm:$0xff]
    %v871 = vld [vmem:[#allocation8 + $0xbc8] sm:$0xff]
    %v872 = vld [vmem:[#allocation8 + $0xbd0] sm:$0xff]
    %v873 = vld [vmem:[#allocation8 + $0xbd8] sm:$0xff]
    %v874 = vld [vmem:[#allocation8 + $0xbe0] sm:$0xff]
    %v875 = vld [vmem:[#allocation8 + $0xbe8] sm:$0xff]
    %v876 = vld [vmem:[#allocation8 + $0xbf0] sm:$0xff]
    %v877 = vld [vmem:[#allocation8 + $0xbf8] sm:$0xff]
    %v878 = vld [vmem:[#allocation8 + $0xc00] sm:$0xff]
    %v879 = vld [vmem:[#allocation8 + $0xc08] sm:$0xff]
    %v880 = vld [vmem:[#allocation8 + $0xc10] sm:$0xff]
    %v881 = vld [vmem:[#allocation8 + $0xc18] sm:$0xff]
    %v882 = vld [vmem:[#allocation8 + $0xc20] sm:$0xff]
    %v883 = vld [vmem:[#allocation8 + $0xc28] sm:$0xff]
    %v884 = vld [vmem:[#allocation8 + $0xc30] sm:$0xff]
    %v885 = vld [vmem:[#allocation8 + $0xc38] sm:$0xff]
    %v886 = vld [vmem:[#allocation8 + $0xc40] sm:$0xff]
    %v887 = vld [vmem:[#allocation8 + $0xc48] sm:$0xff]
    %v888 = vld [vmem:[#allocation8 + $0xc50] sm:$0xff]
    %v889 = vld [vmem:[#allocation8 + $0xc58] sm:$0xff]
    %v890 = vld [vmem:[#allocation8 + $0xc60] sm:$0xff]
    %v891 = vld [vmem:[#allocation8 + $0xc68] sm:$0xff]
    %v892 = vld [vmem:[#allocation8 + $0xc70] sm:$0xff]
    %v893 = vld [vmem:[#allocation8 + $0xc78] sm:$0xff]
    %v894 = vld [vmem:[#allocation8 + $0xc80] sm:$0xff]
    %v895 = vld [vmem:[#allocation8 + $0xc88] sm:$0xff]
    %v896 = vld [vmem:[#allocation8 + $0xc90] sm:$0xff]
    %v897 = vld [vmem:[#allocation8 + $0xc98] sm:$0xff]
    %v898 = vld [vmem:[#allocation8 + $0xca0] sm:$0xff]
    %v899 = vld [vmem:[#allocation8 + $0xca8] sm:$0xff]
    %v900 = vld [vmem:[#allocation8 + $0xcb0] sm:$0xff]
    %v901 = vld [vmem:[#allocation8 + $0xcb8] sm:$0xff]
    %v902 = vld [vmem:[#allocation8 + $0xcc0] sm:$0xff]
    %v903 = vld [vmem:[#allocation8 + $0xcc8] sm:$0xff]
    %v904 = vld [vmem:[#allocation8 + $0xcd0] sm:$0xff]
    %v905 = vld [vmem:[#allocation8 + $0xcd8] sm:$0xff]
    %v906 = vld [vmem:[#allocation8 + $0xce0] sm:$0xff]
    %v907 = vld [vmem:[#allocation8 + $0xce8] sm:$0xff]
    %v908 = vld [vmem:[#allocation8 + $0xcf0] sm:$0xff]
    %v909 = vld [vmem:[#allocation8 + $0xcf8] sm:$0xff]
    %v910 = vld [vmem:[#allocation8 + $0xd00] sm:$0xff]
    %v911 = vld [vmem:[#allocation8 + $0xd08] sm:$0xff]
    %v912 = vld [vmem:[#allocation8 + $0xd10] sm:$0xff]
    %v913 = vld [vmem:[#allocation8 + $0xd18] sm:$0xff]
    %v914 = vld [vmem:[#allocation8 + $0xd20] sm:$0xff]
    %v915 = vld [vmem:[#allocation8 + $0xd28] sm:$0xff]
    %v916 = vld [vmem:[#allocation8 + $0xd30] sm:$0xff]
    %v917 = vld [vmem:[#allocation8 + $0xd38] sm:$0xff]
    %v918 = vld [vmem:[#allocation8 + $0xd40] sm:$0xff]
    %v919 = vld [vmem:[#allocation8 + $0xd48] sm:$0xff]
    %v920 = vld [vmem:[#allocation8 + $0xd50] sm:$0xff]
    %v921 = vld [vmem:[#allocation8 + $0xd58] sm:$0xff]
    %v922 = vld [vmem:[#allocation8 + $0xd60] sm:$0xff]
    %v923 = vld [vmem:[#allocation8 + $0xd68] sm:$0xff]
    %v924 = vld [vmem:[#allocation8 + $0xd70] sm:$0xff]
    %v925 = vld [vmem:[#allocation8 + $0xd78] sm:$0xff]
    %v926 = vld [vmem:[#allocation8 + $0xd80] sm:$0xff]
    %v927 = vld [vmem:[#allocation8 + $0xd88] sm:$0xff]
    %v928 = vld [vmem:[#allocation8 + $0xd90] sm:$0xff]
    %v929 = vld [vmem:[#allocation8 + $0xd98] sm:$0xff]
    %v930 = vld [vmem:[#allocation8 + $0xda0] sm:$0xff]
    %v931 = vld [vmem:[#allocation8 + $0xda8] sm:$0xff]
    %v932 = vld [vmem:[#allocation8 + $0xdb0] sm:$0xff]
    %v933 = vld [vmem:[#allocation8 + $0xdb8] sm:$0xff]
    %v934 = vld [vmem:[#allocation8 + $0xdc0] sm:$0xff]
    %v935 = vld [vmem:[#allocation8 + $0xdc8] sm:$0xff]
    %v936 = vld [vmem:[#allocation8 + $0xdd0] sm:$0xff]
    %v937 = vld [vmem:[#allocation8 + $0xdd8] sm:$0xff]
    %v938 = vld [vmem:[#allocation8 + $0xde0] sm:$0xff]
    %v939 = vld [vmem:[#allocation8 + $0xde8] sm:$0xff]
    %v940 = vld [vmem:[#allocation8 + $0xdf0] sm:$0xff]
    %v941 = vld [vmem:[#allocation8 + $0xdf8] sm:$0xff]
    %v942 = vld [vmem:[#allocation8 + $0xe00] sm:$0xff]
    %v943 = vld [vmem:[#allocation8 + $0xe08] sm:$0xff]
    %v944 = vld [vmem:[#allocation8 + $0xe10] sm:$0xff]
    %v945 = vld [vmem:[#allocation8 + $0xe18] sm:$0xff]
    %v946 = vld [vmem:[#allocation8 + $0xe20] sm:$0xff]
    %v947 = vld [vmem:[#allocation8 + $0xe28] sm:$0xff]
    %v948 = vld [vmem:[#allocation8 + $0xe30] sm:$0xff]
    %v949 = vld [vmem:[#allocation8 + $0xe38] sm:$0xff]
    %v950 = vld [vmem:[#allocation8 + $0xe40] sm:$0xff]
    %v951 = vld [vmem:[#allocation8 + $0xe48] sm:$0xff]
    %v952 = vld [vmem:[#allocation8 + $0xe50] sm:$0xff]
    %v953 = vld [vmem:[#allocation8 + $0xe58] sm:$0xff]
    %v954 = vld [vmem:[#allocation8 + $0xe60] sm:$0xff]
    %v955 = vld [vmem:[#allocation8 + $0xe68] sm:$0xff]
    %v956 = vld [vmem:[#allocation8 + $0xe70] sm:$0xff]
    %v957 = vld [vmem:[#allocation8 + $0xe78] sm:$0xff]
    %v958 = vld [vmem:[#allocation8 + $0xe80] sm:$0xff]
    %v959 = vld [vmem:[#allocation8 + $0xe88] sm:$0xff]
    %v960 = vld [vmem:[#allocation8 + $0xe90] sm:$0xff]
    %v961 = vld [vmem:[#allocation8 + $0xe98] sm:$0xff]
    %v962 = vld [vmem:[#allocation8 + $0xea0] sm:$0xff]
    %v963 = vld [vmem:[#allocation8 + $0xea8] sm:$0xff]
    %v964 = vld [vmem:[#allocation8 + $0xeb0] sm:$0xff]
    %v965 = vld [vmem:[#allocation8 + $0xeb8] sm:$0xff]
    %v966 = vld [vmem:[#allocation8 + $0xec0] sm:$0xff]
    %v967 = vld [vmem:[#allocation8 + $0xec8] sm:$0xff]
    %v968 = vld [vmem:[#allocation8 + $0xed0] sm:$0xff]
    %v969 = vld [vmem:[#allocation8 + $0xed8] sm:$0xff]
    %v970 = vld [vmem:[#allocation8 + $0xee0] sm:$0xff]
    %v971 = vld [vmem:[#allocation8 + $0xee8] sm:$0xff]
    %v972 = vld [vmem:[#allocation8 + $0xef0] sm:$0xff]
    %v973 = vld [vmem:[#allocation8 + $0xef8] sm:$0xff]
    %v974 = vld [vmem:[#allocation8 + $0xf00] sm:$0xff]
    %v975 = vld [vmem:[#allocation8 + $0xf08] sm:$0xff]
    %v976 = vld [vmem:[#allocation8 + $0xf10] sm:$0xff]
    %v977 = vld [vmem:[#allocation8 + $0xf18] sm:$0xff]
    %v978 = vld [vmem:[#allocation8 + $0xf20] sm:$0xff]
    %v979 = vld [vmem:[#allocation8 + $0xf28] sm:$0xff]
    %v980 = vld [vmem:[#allocation8 + $0xf30] sm:$0xff]
    %v981 = vld [vmem:[#allocation8 + $0xf38] sm:$0xff]
    %v982 = vld [vmem:[#allocation8 + $0xf40] sm:$0xff]
    %v983 = vld [vmem:[#allocation8 + $0xf48] sm:$0xff]
    %v984 = vld [vmem:[#allocation8 + $0xf50] sm:$0xff]
    %v985 = vld [vmem:[#allocation8 + $0xf58] sm:$0xff]
    %v986 = vld [vmem:[#allocation8 + $0xf60] sm:$0xff]
    %v987 = vld [vmem:[#allocation8 + $0xf68] sm:$0xff]
    %v988 = vld [vmem:[#allocation8 + $0xf70] sm:$0xff]
    %v989 = vld [vmem:[#allocation8 + $0xf78] sm:$0xff]
    %v990 = vld [vmem:[#allocation8 + $0xf80] sm:$0xff]
    %v991 = vld [vmem:[#allocation8 + $0xf88] sm:$0xff]
    %v992 = vld [vmem:[#allocation8 + $0xf90] sm:$0xff]
    %v993 = vld [vmem:[#allocation8 + $0xf98] sm:$0xff]
    %v994 = vld [vmem:[#allocation8 + $0xfa0] sm:$0xff]
    %v995 = vld [vmem:[#allocation8 + $0xfa8] sm:$0xff]
    %v996 = vld [vmem:[#allocation8 + $0xfb0] sm:$0xff]
    %v997 = vld [vmem:[#allocation8 + $0xfb8] sm:$0xff]
    %v998 = vld [vmem:[#allocation8 + $0xfc0] sm:$0xff]
    %v999 = vld [vmem:[#allocation8 + $0xfc8] sm:$0xff]
    %v1000 = vld [vmem:[#allocation8 + $0xfd0] sm:$0xff]
    %v1001 = vld [vmem:[#allocation8 + $0xfd8] sm:$0xff]
    %v1002 = vld [vmem:[#allocation8 + $0xfe0] sm:$0xff]
    %v1003 = vld [vmem:[#allocation8 + $0xfe8] sm:$0xff]
    %v1004 = vld [vmem:[#allocation8 + $0xff0] sm:$0xff]
    %v1005 = vld [vmem:[#allocation8 + $0xff8] sm:$0xff]
    %v1007 = vlaneseq
    %v1008 = vshrl.u32 %v1007, 7
    %v1009 = vsub.s32 0, %v1008
    %v1010 = vrot.slane %v122, %v1009
    %v1011 = vlaneseq
    %v1012 = vshrl.u32 %v1011, 7
    %v1013 = vsub.s32 1, %v1012
    %v1014 = vrot.slane %v122, %v1013
    %v1015 = vlaneseq
    %v1016 = vshrl.u32 %v1015, 7
    %v1017 = vsub.s32 2, %v1016
    %v1018 = vrot.slane %v122, %v1017
    %v1019 = vlaneseq
    %v1020 = vshrl.u32 %v1019, 7
    %v1021 = vsub.s32 3, %v1020
    %v1022 = vrot.slane %v122, %v1021
    %1027 = vmatprep.subr.mxu0 %v555
    %1028 = vmatpush1.msra.mxu0 %v554
    %1029 = vmatprep.subr.mxu0 %v551
    %1030 = vmatpush1.msra.mxu0 %v550
    %1031 = vmatprep.subr.mxu0 %v547
    %1032 = vmatpush1.msra.mxu0 %v546
    %1033 = vmatprep.subr.mxu0 %v543
    %1034 = vmatpush1.msra.mxu0 %v542
    %1035 = vmatprep.subr.mxu0 %v539
    %1036 = vmatpush1.msra.mxu0 %v538
    %1037 = vmatprep.subr.mxu0 %v535
    %1038 = vmatpush1.msra.mxu0 %v534
    %1039 = vmatprep.subr.mxu0 %v531
    %1040 = vmatpush1.msra.mxu0 %v530
    %1041 = vmatprep.subr.mxu0 %v527
    %1042 = vmatpush1.msra.mxu0 %v526
    %1043 = vmatprep.subr.mxu0 %v523
    %1044 = vmatpush1.msra.mxu0 %v522
    %1045 = vmatprep.subr.mxu0 %v519
    %1046 = vmatpush1.msra.mxu0 %v518
    %1047 = vmatprep.subr.mxu0 %v515
    %1048 = vmatpush1.msra.mxu0 %v514
    %1049 = vmatprep.subr.mxu0 %v511
    %1050 = vmatpush1.msra.mxu0 %v510
    %1051 = vmatprep.subr.mxu0 %v507
    %1052 = vmatpush1.msra.mxu0 %v506
    %1053 = vmatprep.subr.mxu0 %v503
    %1054 = vmatpush1.msra.mxu0 %v502
    %1055 = vmatprep.subr.mxu0 %v499
    %1056 = vmatpush1.msra.mxu0 %v498
    %1057 = vmatprep.subr.mxu0 %v495
    %1058 = vmatpush1.msra.mxu0 %v494
    %1059 = vmatprep.subr.mxu0 %v619
    %1060 = vmatpush2.msra.mxu0 %v618
    %1061 = vmatprep.subr.mxu0 %v615
    %1062 = vmatpush2.msra.mxu0 %v614
    %1063 = vmatprep.subr.mxu0 %v611
    %1064 = vmatpush2.msra.mxu0 %v610
    %1065 = vmatprep.subr.mxu0 %v607
    %1066 = vmatpush2.msra.mxu0 %v606
    %1067 = vmatprep.subr.mxu0 %v603
    %1068 = vmatpush2.msra.mxu0 %v602
    %1069 = vmatprep.subr.mxu0 %v599
    %1070 = vmatpush2.msra.mxu0 %v598
    %1071 = vmatprep.subr.mxu0 %v595
    %1072 = vmatpush2.msra.mxu0 %v594
    %1073 = vmatprep.subr.mxu0 %v591
    %1074 = vmatpush2.msra.mxu0 %v590
    %1075 = vmatprep.subr.mxu0 %v587
    %1076 = vmatpush2.msra.mxu0 %v586
    %1077 = vmatprep.subr.mxu0 %v583
    %1078 = vmatpush2.msra.mxu0 %v582
    %1079 = vmatprep.subr.mxu0 %v579
    %1080 = vmatpush2.msra.mxu0 %v578
    %1081 = vmatprep.subr.mxu0 %v575
    %1082 = vmatpush2.msra.mxu0 %v574
    %1083 = vmatprep.subr.mxu0 %v571
    %1084 = vmatpush2.msra.mxu0 %v570
    %1085 = vmatprep.subr.mxu0 %v567
    %1086 = vmatpush2.msra.mxu0 %v566
    %1087 = vmatprep.subr.mxu0 %v563
    %1088 = vmatpush2.msra.mxu0 %v562
    %1089 = vmatprep.subr.mxu0 %v559
    %1090 = vmatpush2.msra.mxu0 %v558
    %1091 = vmatprep.mubr.f32.mxu0 %v487
    %1092 = vmatmul.mubr.f32.gmra.mxu0 %v486
    %v1093 = vpop.f32.mrf.mxu0
    %v1094 = vadd.f32 %v1010, %v1093
    %v1095 = vpop.f32.mrf.mxu0
    %v1096 = vadd.f32 %v1014, %v1095
    %1097 = vdwg.mxu0
    %1098 = vmatprep.subr.mxu0 %v683
    %1099 = vmatpush1.msra.mxu0 %v682
    %1100 = vmatprep.subr.mxu0 %v679
    %1101 = vmatpush1.msra.mxu0 %v678
    %1102 = vmatprep.subr.mxu0 %v675
    %1103 = vmatpush1.msra.mxu0 %v674
    %1104 = vmatprep.subr.mxu0 %v671
    %1105 = vmatpush1.msra.mxu0 %v670
    %1106 = vmatprep.subr.mxu0 %v667
    %1107 = vmatpush1.msra.mxu0 %v666
    %1108 = vmatprep.subr.mxu0 %v663
    %1109 = vmatpush1.msra.mxu0 %v662
    %1110 = vmatprep.subr.mxu0 %v659
    %1111 = vmatpush1.msra.mxu0 %v658
    %1112 = vmatprep.subr.mxu0 %v655
    %1113 = vmatpush1.msra.mxu0 %v654
    %1114 = vmatprep.subr.mxu0 %v651
    %1115 = vmatpush1.msra.mxu0 %v650
    %1116 = vmatprep.subr.mxu0 %v647
    %1117 = vmatpush1.msra.mxu0 %v646
    %1118 = vmatprep.subr.mxu0 %v643
    %1119 = vmatpush1.msra.mxu0 %v642
    %1120 = vmatprep.subr.mxu0 %v639
    %1121 = vmatpush1.msra.mxu0 %v638
    %1122 = vmatprep.subr.mxu0 %v635
    %1123 = vmatpush1.msra.mxu0 %v634
    %1124 = vmatprep.subr.mxu0 %v631
    %1125 = vmatpush1.msra.mxu0 %v630
    %1126 = vmatprep.subr.mxu0 %v627
    %1127 = vmatpush1.msra.mxu0 %v626
    %1128 = vmatprep.subr.mxu0 %v623
    %1129 = vmatpush1.msra.mxu0 %v622
    %1130 = vmatprep.subr.mxu0 %v747
    %1131 = vmatpush2.msra.mxu0 %v746
    %1132 = vmatprep.subr.mxu0 %v743
    %1133 = vmatpush2.msra.mxu0 %v742
    %1134 = vmatprep.subr.mxu0 %v739
    %1135 = vmatpush2.msra.mxu0 %v738
    %1136 = vmatprep.subr.mxu0 %v735
    %1137 = vmatpush2.msra.mxu0 %v734
    %1138 = vmatprep.subr.mxu0 %v731
    %1139 = vmatpush2.msra.mxu0 %v730
    %1140 = vmatprep.subr.mxu0 %v727
    %1141 = vmatpush2.msra.mxu0 %v726
    %1142 = vmatprep.subr.mxu0 %v723
    %1143 = vmatpush2.msra.mxu0 %v722
    %1144 = vmatprep.subr.mxu0 %v719
    %1145 = vmatpush2.msra.mxu0 %v718
    %1146 = vmatprep.subr.mxu0 %v715
    %1147 = vmatpush2.msra.mxu0 %v714
    %1148 = vmatprep.subr.mxu0 %v711
    %1149 = vmatpush2.msra.mxu0 %v710
    %1150 = vmatprep.subr.mxu0 %v707
    %1151 = vmatpush2.msra.mxu0 %v706
    %1152 = vmatprep.subr.mxu0 %v703
    %1153 = vmatpush2.msra.mxu0 %v702
    %1154 = vmatprep.subr.mxu0 %v699
    %1155 = vmatpush2.msra.mxu0 %v698
    %1156 = vmatprep.subr.mxu0 %v695
    %1157 = vmatpush2.msra.mxu0 %v694
    %1158 = vmatprep.subr.mxu0 %v691
    %1159 = vmatpush2.msra.mxu0 %v690
    %1160 = vmatprep.subr.mxu0 %v687
    %1161 = vmatpush2.msra.mxu0 %v686
    %1162 = vmatprep.mubr.f32.mxu0 %v489
    %1163 = vmatmul.mubr.f32.gmra.mxu0 %v488
    %v1164 = vpop.f32.mrf.mxu0
    %v1165 = vadd.f32 %v1094, %v1164
    %v1166 = vpop.f32.mrf.mxu0
    %v1167 = vadd.f32 %v1096, %v1166
    %1168 = vdwg.mxu0
    %1169 = vmatprep.subr.mxu0 %v811
    %1170 = vmatpush1.msra.mxu0 %v810
    %1171 = vmatprep.subr.mxu0 %v807
    %1172 = vmatpush1.msra.mxu0 %v806
    %1173 = vmatprep.subr.mxu0 %v803
    %1174 = vmatpush1.msra.mxu0 %v802
    %1175 = vmatprep.subr.mxu0 %v799
    %1176 = vmatpush1.msra.mxu0 %v798
    %1177 = vmatprep.subr.mxu0 %v795
    %1178 = vmatpush1.msra.mxu0 %v794
    %1179 = vmatprep.subr.mxu0 %v791
    %1180 = vmatpush1.msra.mxu0 %v790
    %1181 = vmatprep.subr.mxu0 %v787
    %1182 = vmatpush1.msra.mxu0 %v786
    %1183 = vmatprep.subr.mxu0 %v783
    %1184 = vmatpush1.msra.mxu0 %v782
    %1185 = vmatprep.subr.mxu0 %v779
    %1186 = vmatpush1.msra.mxu0 %v778
    %1187 = vmatprep.subr.mxu0 %v775
    %1188 = vmatpush1.msra.mxu0 %v774
    %1189 = vmatprep.subr.mxu0 %v771
    %1190 = vmatpush1.msra.mxu0 %v770
    %1191 = vmatprep.subr.mxu0 %v767
    %1192 = vmatpush1.msra.mxu0 %v766
    %1193 = vmatprep.subr.mxu0 %v763
    %1194 = vmatpush1.msra.mxu0 %v762
    %1195 = vmatprep.subr.mxu0 %v759
    %1196 = vmatpush1.msra.mxu0 %v758
    %1197 = vmatprep.subr.mxu0 %v755
    %1198 = vmatpush1.msra.mxu0 %v754
    %1199 = vmatprep.subr.mxu0 %v751
    %1200 = vmatpush1.msra.mxu0 %v750
    %1201 = vmatprep.subr.mxu0 %v875
    %1202 = vmatpush2.msra.mxu0 %v874
    %1203 = vmatprep.subr.mxu0 %v871
    %1204 = vmatpush2.msra.mxu0 %v870
    %1205 = vmatprep.subr.mxu0 %v867
    %1206 = vmatpush2.msra.mxu0 %v866
    %1207 = vmatprep.subr.mxu0 %v863
    %1208 = vmatpush2.msra.mxu0 %v862
    %1209 = vmatprep.subr.mxu0 %v859
    %1210 = vmatpush2.msra.mxu0 %v858
    %1211 = vmatprep.subr.mxu0 %v855
    %1212 = vmatpush2.msra.mxu0 %v854
    %1213 = vmatprep.subr.mxu0 %v851
    %1214 = vmatpush2.msra.mxu0 %v850
    %1215 = vmatprep.subr.mxu0 %v847
    %1216 = vmatpush2.msra.mxu0 %v846
    %1217 = vmatprep.subr.mxu0 %v843
    %1218 = vmatpush2.msra.mxu0 %v842
    %1219 = vmatprep.subr.mxu0 %v839
    %1220 = vmatpush2.msra.mxu0 %v838
    %1221 = vmatprep.subr.mxu0 %v835
    %1222 = vmatpush2.msra.mxu0 %v834
    %1223 = vmatprep.subr.mxu0 %v831
    %1224 = vmatpush2.msra.mxu0 %v830
    %1225 = vmatprep.subr.mxu0 %v827
    %1226 = vmatpush2.msra.mxu0 %v826
    %1227 = vmatprep.subr.mxu0 %v823
    %1228 = vmatpush2.msra.mxu0 %v822
    %1229 = vmatprep.subr.mxu0 %v819
    %1230 = vmatpush2.msra.mxu0 %v818
    %1231 = vmatprep.subr.mxu0 %v815
    %1232 = vmatpush2.msra.mxu0 %v814
    %1233 = vmatprep.mubr.f32.mxu0 %v491
    %1234 = vmatmul.mubr.f32.gmra.mxu0 %v490
    %v1235 = vpop.f32.mrf.mxu0
    %v1236 = vadd.f32 %v1165, %v1235
    %v1237 = vpop.f32.mrf.mxu0
    %v1238 = vadd.f32 %v1167, %v1237
    %1239 = vdwg.mxu0
    %1240 = vmatprep.subr.mxu0 %v939
    %1241 = vmatpush1.msra.mxu0 %v938
    %1242 = vmatprep.subr.mxu0 %v935
    %1243 = vmatpush1.msra.mxu0 %v934
    %1244 = vmatprep.subr.mxu0 %v931
    %1245 = vmatpush1.msra.mxu0 %v930
    %1246 = vmatprep.subr.mxu0 %v927
    %1247 = vmatpush1.msra.mxu0 %v926
    %1248 = vmatprep.subr.mxu0 %v923
    %1249 = vmatpush1.msra.mxu0 %v922
    %1250 = vmatprep.subr.mxu0 %v919
    %1251 = vmatpush1.msra.mxu0 %v918
    %1252 = vmatprep.subr.mxu0 %v915
    %1253 = vmatpush1.msra.mxu0 %v914
    %1254 = vmatprep.subr.mxu0 %v911
    %1255 = vmatpush1.msra.mxu0 %v910
    %1256 = vmatprep.subr.mxu0 %v907
    %1257 = vmatpush1.msra.mxu0 %v906
    %1258 = vmatprep.subr.mxu0 %v903
    %1259 = vmatpush1.msra.mxu0 %v902
    %1260 = vmatprep.subr.mxu0 %v899
    %1261 = vmatpush1.msra.mxu0 %v898
    %1262 = vmatprep.subr.mxu0 %v895
    %1263 = vmatpush1.msra.mxu0 %v894
    %1264 = vmatprep.subr.mxu0 %v891
    %1265 = vmatpush1.msra.mxu0 %v890
    %1266 = vmatprep.subr.mxu0 %v887
    %1267 = vmatpush1.msra.mxu0 %v886
    %1268 = vmatprep.subr.mxu0 %v883
    %1269 = vmatpush1.msra.mxu0 %v882
    %1270 = vmatprep.subr.mxu0 %v879
    %1271 = vmatpush1.msra.mxu0 %v878
    %1272 = vmatprep.subr.mxu0 %v1003
    %1273 = vmatpush2.msra.mxu0 %v1002
    %1274 = vmatprep.subr.mxu0 %v999
    %1275 = vmatpush2.msra.mxu0 %v998
    %1276 = vmatprep.subr.mxu0 %v995
    %1277 = vmatpush2.msra.mxu0 %v994
    %1278 = vmatprep.subr.mxu0 %v991
    %1279 = vmatpush2.msra.mxu0 %v990
    %1280 = vmatprep.subr.mxu0 %v987
    %1281 = vmatpush2.msra.mxu0 %v986
    %1282 = vmatprep.subr.mxu0 %v983
    %1283 = vmatpush2.msra.mxu0 %v982
    %1284 = vmatprep.subr.mxu0 %v979
    %1285 = vmatpush2.msra.mxu0 %v978
    %1286 = vmatprep.subr.mxu0 %v975
    %1287 = vmatpush2.msra.mxu0 %v974
    %1288 = vmatprep.subr.mxu0 %v971
    %1289 = vmatpush2.msra.mxu0 %v970
    %1290 = vmatprep.subr.mxu0 %v967
    %1291 = vmatpush2.msra.mxu0 %v966
    %1292 = vmatprep.subr.mxu0 %v963
    %1293 = vmatpush2.msra.mxu0 %v962
    %1294 = vmatprep.subr.mxu0 %v959
    %1295 = vmatpush2.msra.mxu0 %v958
    %1296 = vmatprep.subr.mxu0 %v955
    %1297 = vmatpush2.msra.mxu0 %v954
    %1298 = vmatprep.subr.mxu0 %v951
    %1299 = vmatpush2.msra.mxu0 %v950
    %1300 = vmatprep.subr.mxu0 %v947
    %1301 = vmatpush2.msra.mxu0 %v946
    %1302 = vmatprep.subr.mxu0 %v943
    %1303 = vmatpush2.msra.mxu0 %v942
    %1304 = vmatprep.mubr.f32.mxu0 %v493
    %1305 = vmatmul.mubr.f32.gmra.mxu0 %v492
    %v1306 = vpop.f32.mrf.mxu0
    %v1307 = vadd.f32 %v1236, %v1306
    %v1308 = vpop.f32.mrf.mxu0
    %v1309 = vadd.f32 %v1238, %v1308
    %1310 = vdwg.mxu0
    %1311 = vmatprep.subr.mxu0 %v557
    %1312 = vmatpush1.msra.mxu0 %v556
    %1313 = vmatprep.subr.mxu0 %v553
    %1314 = vmatpush1.msra.mxu0 %v552
    %1315 = vmatprep.subr.mxu0 %v549
    %1316 = vmatpush1.msra.mxu0 %v548
    %1317 = vmatprep.subr.mxu0 %v545
    %1318 = vmatpush1.msra.mxu0 %v544
    %1319 = vmatprep.subr.mxu0 %v541
    %1320 = vmatpush1.msra.mxu0 %v540
    %1321 = vmatprep.subr.mxu0 %v537
    %1322 = vmatpush1.msra.mxu0 %v536
    %1323 = vmatprep.subr.mxu0 %v533
    %1324 = vmatpush1.msra.mxu0 %v532
    %1325 = vmatprep.subr.mxu0 %v529
    %1326 = vmatpush1.msra.mxu0 %v528
    %1327 = vmatprep.subr.mxu0 %v525
    %1328 = vmatpush1.msra.mxu0 %v524
    %1329 = vmatprep.subr.mxu0 %v521
    %1330 = vmatpush1.msra.mxu0 %v520
    %1331 = vmatprep.subr.mxu0 %v517
    %1332 = vmatpush1.msra.mxu0 %v516
    %1333 = vmatprep.subr.mxu0 %v513
    %1334 = vmatpush1.msra.mxu0 %v512
    %1335 = vmatprep.subr.mxu0 %v509
    %1336 = vmatpush1.msra.mxu0 %v508
    %1337 = vmatprep.subr.mxu0 %v505
    %1338 = vmatpush1.msra.mxu0 %v504
    %1339 = vmatprep.subr.mxu0 %v501
    %1340 = vmatpush1.msra.mxu0 %v500
    %1341 = vmatprep.subr.mxu0 %v497
    %1342 = vmatpush1.msra.mxu0 %v496
    %1343 = vmatprep.subr.mxu0 %v621
    %1344 = vmatpush2.msra.mxu0 %v620
    %1345 = vmatprep.subr.mxu0 %v617
    %1346 = vmatpush2.msra.mxu0 %v616
    %1347 = vmatprep.subr.mxu0 %v613
    %1348 = vmatpush2.msra.mxu0 %v612
    %1349 = vmatprep.subr.mxu0 %v609
    %1350 = vmatpush2.msra.mxu0 %v608
    %1351 = vmatprep.subr.mxu0 %v605
    %1352 = vmatpush2.msra.mxu0 %v604
    %1353 = vmatprep.subr.mxu0 %v601
    %1354 = vmatpush2.msra.mxu0 %v600
    %1355 = vmatprep.subr.mxu0 %v597
    %1356 = vmatpush2.msra.mxu0 %v596
    %1357 = vmatprep.subr.mxu0 %v593
    %1358 = vmatpush2.msra.mxu0 %v592
    %1359 = vmatprep.subr.mxu0 %v589
    %1360 = vmatpush2.msra.mxu0 %v588
    %1361 = vmatprep.subr.mxu0 %v585
    %1362 = vmatpush2.msra.mxu0 %v584
    %1363 = vmatprep.subr.mxu0 %v581
    %1364 = vmatpush2.msra.mxu0 %v580
    %1365 = vmatprep.subr.mxu0 %v577
    %1366 = vmatpush2.msra.mxu0 %v576
    %1367 = vmatprep.subr.mxu0 %v573
    %1368 = vmatpush2.msra.mxu0 %v572
    %1369 = vmatprep.subr.mxu0 %v569
    %1370 = vmatpush2.msra.mxu0 %v568
    %1371 = vmatprep.subr.mxu0 %v565
    %1372 = vmatpush2.msra.mxu0 %v564
    %1373 = vmatprep.subr.mxu0 %v561
    %1374 = vmatpush2.msra.mxu0 %v560
    %1375 = vmatprep.mubr.f32.mxu0 %v487
    %1376 = vmatmul.mubr.f32.gmra.mxu0 %v486
    %v1377 = vpop.f32.mrf.mxu0
    %v1378 = vadd.f32 %v1018, %v1377
    %v1379 = vpop.f32.mrf.mxu0
    %v1380 = vadd.f32 %v1022, %v1379
    %1381 = vdwg.mxu0
    %1382 = vmatprep.subr.mxu0 %v685
    %1383 = vmatpush1.msra.mxu0 %v684
    %1384 = vmatprep.subr.mxu0 %v681
    %1385 = vmatpush1.msra.mxu0 %v680
    %1386 = vmatprep.subr.mxu0 %v677
    %1387 = vmatpush1.msra.mxu0 %v676
    %1388 = vmatprep.subr.mxu0 %v673
    %1389 = vmatpush1.msra.mxu0 %v672
    %1390 = vmatprep.subr.mxu0 %v669
    %1391 = vmatpush1.msra.mxu0 %v668
    %1392 = vmatprep.subr.mxu0 %v665
    %1393 = vmatpush1.msra.mxu0 %v664
    %1394 = vmatprep.subr.mxu0 %v661
    %1395 = vmatpush1.msra.mxu0 %v660
    %1396 = vmatprep.subr.mxu0 %v657
    %1397 = vmatpush1.msra.mxu0 %v656
    %1398 = vmatprep.subr.mxu0 %v653
    %1399 = vmatpush1.msra.mxu0 %v652
    %1400 = vmatprep.subr.mxu0 %v649
    %1401 = vmatpush1.msra.mxu0 %v648
    %1402 = vmatprep.subr.mxu0 %v645
    %1403 = vmatpush1.msra.mxu0 %v644
    %1404 = vmatprep.subr.mxu0 %v641
    %1405 = vmatpush1.msra.mxu0 %v640
    %1406 = vmatprep.subr.mxu0 %v637
    %1407 = vmatpush1.msra.mxu0 %v636
    %1408 = vmatprep.subr.mxu0 %v633
    %1409 = vmatpush1.msra.mxu0 %v632
    %1410 = vmatprep.subr.mxu0 %v629
    %1411 = vmatpush1.msra.mxu0 %v628
    %1412 = vmatprep.subr.mxu0 %v625
    %1413 = vmatpush1.msra.mxu0 %v624
    %1414 = vmatprep.subr.mxu0 %v749
    %1415 = vmatpush2.msra.mxu0 %v748
    %1416 = vmatprep.subr.mxu0 %v745
    %1417 = vmatpush2.msra.mxu0 %v744
    %1418 = vmatprep.subr.mxu0 %v741
    %1419 = vmatpush2.msra.mxu0 %v740
    %1420 = vmatprep.subr.mxu0 %v737
    %1421 = vmatpush2.msra.mxu0 %v736
    %1422 = vmatprep.subr.mxu0 %v733
    %1423 = vmatpush2.msra.mxu0 %v732
    %1424 = vmatprep.subr.mxu0 %v729
    %1425 = vmatpush2.msra.mxu0 %v728
    %1426 = vmatprep.subr.mxu0 %v725
    %1427 = vmatpush2.msra.mxu0 %v724
    %1428 = vmatprep.subr.mxu0 %v721
    %1429 = vmatpush2.msra.mxu0 %v720
    %1430 = vmatprep.subr.mxu0 %v717
    %1431 = vmatpush2.msra.mxu0 %v716
    %1432 = vmatprep.subr.mxu0 %v713
    %1433 = vmatpush2.msra.mxu0 %v712
    %1434 = vmatprep.subr.mxu0 %v709
    %1435 = vmatpush2.msra.mxu0 %v708
    %1436 = vmatprep.subr.mxu0 %v705
    %1437 = vmatpush2.msra.mxu0 %v704
    %1438 = vmatprep.subr.mxu0 %v701
    %1439 = vmatpush2.msra.mxu0 %v700
    %1440 = vmatprep.subr.mxu0 %v697
    %1441 = vmatpush2.msra.mxu0 %v696
    %1442 = vmatprep.subr.mxu0 %v693
    %1443 = vmatpush2.msra.mxu0 %v692
    %1444 = vmatprep.subr.mxu0 %v689
    %1445 = vmatpush2.msra.mxu0 %v688
    %1446 = vmatprep.mubr.f32.mxu0 %v489
    %1447 = vmatmul.mubr.f32.gmra.mxu0 %v488
    %v1448 = vpop.f32.mrf.mxu0
    %v1449 = vadd.f32 %v1378, %v1448
    %v1450 = vpop.f32.mrf.mxu0
    %v1451 = vadd.f32 %v1380, %v1450
    %1452 = vdwg.mxu0
    %1453 = vmatprep.subr.mxu0 %v813
    %1454 = vmatpush1.msra.mxu0 %v812
    %1455 = vmatprep.subr.mxu0 %v809
    %1456 = vmatpush1.msra.mxu0 %v808
    %1457 = vmatprep.subr.mxu0 %v805
    %1458 = vmatpush1.msra.mxu0 %v804
    %1459 = vmatprep.subr.mxu0 %v801
    %1460 = vmatpush1.msra.mxu0 %v800
    %1461 = vmatprep.subr.mxu0 %v797
    %1462 = vmatpush1.msra.mxu0 %v796
    %1463 = vmatprep.subr.mxu0 %v793
    %1464 = vmatpush1.msra.mxu0 %v792
    %1465 = vmatprep.subr.mxu0 %v789
    %1466 = vmatpush1.msra.mxu0 %v788
    %1467 = vmatprep.subr.mxu0 %v785
    %1468 = vmatpush1.msra.mxu0 %v784
    %1469 = vmatprep.subr.mxu0 %v781
    %1470 = vmatpush1.msra.mxu0 %v780
    %1471 = vmatprep.subr.mxu0 %v777
    %1472 = vmatpush1.msra.mxu0 %v776
    %1473 = vmatprep.subr.mxu0 %v773
    %1474 = vmatpush1.msra.mxu0 %v772
    %1475 = vmatprep.subr.mxu0 %v769
    %1476 = vmatpush1.msra.mxu0 %v768
    %1477 = vmatprep.subr.mxu0 %v765
    %1478 = vmatpush1.msra.mxu0 %v764
    %1479 = vmatprep.subr.mxu0 %v761
    %1480 = vmatpush1.msra.mxu0 %v760
    %1481 = vmatprep.subr.mxu0 %v757
    %1482 = vmatpush1.msra.mxu0 %v756
    %1483 = vmatprep.subr.mxu0 %v753
    %1484 = vmatpush1.msra.mxu0 %v752
    %1485 = vmatprep.subr.mxu0 %v877
    %1486 = vmatpush2.msra.mxu0 %v876
    %1487 = vmatprep.subr.mxu0 %v873
    %1488 = vmatpush2.msra.mxu0 %v872
    %1489 = vmatprep.subr.mxu0 %v869
    %1490 = vmatpush2.msra.mxu0 %v868
    %1491 = vmatprep.subr.mxu0 %v865
    %1492 = vmatpush2.msra.mxu0 %v864
    %1493 = vmatprep.subr.mxu0 %v861
    %1494 = vmatpush2.msra.mxu0 %v860
    %1495 = vmatprep.subr.mxu0 %v857
    %1496 = vmatpush2.msra.mxu0 %v856
    %1497 = vmatprep.subr.mxu0 %v853
    %1498 = vmatpush2.msra.mxu0 %v852
    %1499 = vmatprep.subr.mxu0 %v849
    %1500 = vmatpush2.msra.mxu0 %v848
    %1501 = vmatprep.subr.mxu0 %v845
    %1502 = vmatpush2.msra.mxu0 %v844
    %1503 = vmatprep.subr.mxu0 %v841
    %1504 = vmatpush2.msra.mxu0 %v840
    %1505 = vmatprep.subr.mxu0 %v837
    %1506 = vmatpush2.msra.mxu0 %v836
    %1507 = vmatprep.subr.mxu0 %v833
    %1508 = vmatpush2.msra.mxu0 %v832
    %1509 = vmatprep.subr.mxu0 %v829
    %1510 = vmatpush2.msra.mxu0 %v828
    %1511 = vmatprep.subr.mxu0 %v825
    %1512 = vmatpush2.msra.mxu0 %v824
    %1513 = vmatprep.subr.mxu0 %v821
    %1514 = vmatpush2.msra.mxu0 %v820
    %1515 = vmatprep.subr.mxu0 %v817
    %1516 = vmatpush2.msra.mxu0 %v816
    %1517 = vmatprep.mubr.f32.mxu0 %v491
    %1518 = vmatmul.mubr.f32.gmra.mxu0 %v490
    %v1519 = vpop.f32.mrf.mxu0
    %v1520 = vadd.f32 %v1449, %v1519
    %v1521 = vpop.f32.mrf.mxu0
    %v1522 = vadd.f32 %v1451, %v1521
    %1523 = vdwg.mxu0
    %1524 = vmatprep.subr.mxu0 %v941
    %1525 = vmatpush1.msra.mxu0 %v940
    %1526 = vmatprep.subr.mxu0 %v937
    %1527 = vmatpush1.msra.mxu0 %v936
    %1528 = vmatprep.subr.mxu0 %v933
    %1529 = vmatpush1.msra.mxu0 %v932
    %1530 = vmatprep.subr.mxu0 %v929
    %1531 = vmatpush1.msra.mxu0 %v928
    %1532 = vmatprep.subr.mxu0 %v925
    %1533 = vmatpush1.msra.mxu0 %v924
    %1534 = vmatprep.subr.mxu0 %v921
    %1535 = vmatpush1.msra.mxu0 %v920
    %1536 = vmatprep.subr.mxu0 %v917
    %1537 = vmatpush1.msra.mxu0 %v916
    %1538 = vmatprep.subr.mxu0 %v913
    %1539 = vmatpush1.msra.mxu0 %v912
    %1540 = vmatprep.subr.mxu0 %v909
    %1541 = vmatpush1.msra.mxu0 %v908
    %1542 = vmatprep.subr.mxu0 %v905
    %1543 = vmatpush1.msra.mxu0 %v904
    %1544 = vmatprep.subr.mxu0 %v901
    %1545 = vmatpush1.msra.mxu0 %v900
    %1546 = vmatprep.subr.mxu0 %v897
    %1547 = vmatpush1.msra.mxu0 %v896
    %1548 = vmatprep.subr.mxu0 %v893
    %1549 = vmatpush1.msra.mxu0 %v892
    %1550 = vmatprep.subr.mxu0 %v889
    %1551 = vmatpush1.msra.mxu0 %v888
    %1552 = vmatprep.subr.mxu0 %v885
    %1553 = vmatpush1.msra.mxu0 %v884
    %1554 = vmatprep.subr.mxu0 %v881
    %1555 = vmatpush1.msra.mxu0 %v880
    %1556 = vmatprep.subr.mxu0 %v1005
    %1557 = vmatpush2.msra.mxu0 %v1004
    %1558 = vmatprep.subr.mxu0 %v1001
    %1559 = vmatpush2.msra.mxu0 %v1000
    %1560 = vmatprep.subr.mxu0 %v997
    %1561 = vmatpush2.msra.mxu0 %v996
    %1562 = vmatprep.subr.mxu0 %v993
    %1563 = vmatpush2.msra.mxu0 %v992
    %1564 = vmatprep.subr.mxu0 %v989
    %1565 = vmatpush2.msra.mxu0 %v988
    %1566 = vmatprep.subr.mxu0 %v985
    %1567 = vmatpush2.msra.mxu0 %v984
    %1568 = vmatprep.subr.mxu0 %v981
    %1569 = vmatpush2.msra.mxu0 %v980
    %1570 = vmatprep.subr.mxu0 %v977
    %1571 = vmatpush2.msra.mxu0 %v976
    %1572 = vmatprep.subr.mxu0 %v973
    %1573 = vmatpush2.msra.mxu0 %v972
    %1574 = vmatprep.subr.mxu0 %v969
    %1575 = vmatpush2.msra.mxu0 %v968
    %1576 = vmatprep.subr.mxu0 %v965
    %1577 = vmatpush2.msra.mxu0 %v964
    %1578 = vmatprep.subr.mxu0 %v961
    %1579 = vmatpush2.msra.mxu0 %v960
    %1580 = vmatprep.subr.mxu0 %v957
    %1581 = vmatpush2.msra.mxu0 %v956
    %1582 = vmatprep.subr.mxu0 %v953
    %1583 = vmatpush2.msra.mxu0 %v952
    %1584 = vmatprep.subr.mxu0 %v949
    %1585 = vmatpush2.msra.mxu0 %v948
    %1586 = vmatprep.subr.mxu0 %v945
    %1587 = vmatpush2.msra.mxu0 %v944
    %1588 = vmatprep.mubr.f32.mxu0 %v493
    %1589 = vmatmul.mubr.f32.gmra.mxu0 %v492
    %v1590 = vpop.f32.mrf.mxu0
    %v1591 = vadd.f32 %v1520, %v1590
    %v1592 = vpop.f32.mrf.mxu0
    %v1593 = vadd.f32 %v1522, %v1592
    %1594 = vdwg.mxu0
    %v1595 = vmax.f32 %v1307, 0.0
    %v1596 = vmax.f32 %v1309, 0.0
    %v1597 = vmax.f32 %v1591, 0.0
    %v1598 = vmax.f32 %v1593, 0.0
    %v1599 = vld [vmem:[#allocation11] sm:$0xff]
    %v1600 = vld [vmem:[#allocation11 + $0x8] sm:$0xff]
    %v1601 = vld [vmem:[#allocation11 + $0x10] sm:$0xff]
    %v1602 = vld [vmem:[#allocation11 + $0x18] sm:$0xff]
    %v1603 = vld [vmem:[#allocation11 + $0x20] sm:$0xff]
    %v1604 = vld [vmem:[#allocation11 + $0x28] sm:$0xff]
    %v1605 = vld [vmem:[#allocation11 + $0x30] sm:$0xff]
    %v1606 = vld [vmem:[#allocation11 + $0x38] sm:$0xff]
    %v1607 = vld [vmem:[#allocation11 + $0x40] sm:$0xff]
    %v1608 = vld [vmem:[#allocation11 + $0x48] sm:$0xff]
    %v1609 = vld [vmem:[#allocation11 + $0x50] sm:$0xff]
    %v1610 = vld [vmem:[#allocation11 + $0x58] sm:$0xff]
    %v1611 = vld [vmem:[#allocation11 + $0x60] sm:$0xff]
    %v1612 = vld [vmem:[#allocation11 + $0x68] sm:$0xff]
    %v1613 = vld [vmem:[#allocation11 + $0x70] sm:$0xff]
    %v1614 = vld [vmem:[#allocation11 + $0x78] sm:$0xff]
    %v1615 = vld [vmem:[#allocation11 + $0x80] sm:$0xff]
    %v1616 = vld [vmem:[#allocation11 + $0x88] sm:$0xff]
    %v1617 = vld [vmem:[#allocation11 + $0x90] sm:$0xff]
    %v1618 = vld [vmem:[#allocation11 + $0x98] sm:$0xff]
    %v1619 = vld [vmem:[#allocation11 + $0xa0] sm:$0xff]
    %v1620 = vld [vmem:[#allocation11 + $0xa8] sm:$0xff]
    %v1621 = vld [vmem:[#allocation11 + $0xb0] sm:$0xff]
    %v1622 = vld [vmem:[#allocation11 + $0xb8] sm:$0xff]
    %v1623 = vld [vmem:[#allocation11 + $0xc0] sm:$0xff]
    %v1624 = vld [vmem:[#allocation11 + $0xc8] sm:$0xff]
    %v1625 = vld [vmem:[#allocation11 + $0xd0] sm:$0xff]
    %v1626 = vld [vmem:[#allocation11 + $0xd8] sm:$0xff]
    %v1627 = vld [vmem:[#allocation11 + $0xe0] sm:$0xff]
    %v1628 = vld [vmem:[#allocation11 + $0xe8] sm:$0xff]
    %v1629 = vld [vmem:[#allocation11 + $0xf0] sm:$0xff]
    %v1630 = vld [vmem:[#allocation11 + $0xf8] sm:$0xff]
    %v1631 = vld [vmem:[#allocation11 + $0x100] sm:$0xff]
    %v1632 = vld [vmem:[#allocation11 + $0x108] sm:$0xff]
    %v1633 = vld [vmem:[#allocation11 + $0x110] sm:$0xff]
    %v1634 = vld [vmem:[#allocation11 + $0x118] sm:$0xff]
    %v1635 = vld [vmem:[#allocation11 + $0x120] sm:$0xff]
    %v1636 = vld [vmem:[#allocation11 + $0x128] sm:$0xff]
    %v1637 = vld [vmem:[#allocation11 + $0x130] sm:$0xff]
    %v1638 = vld [vmem:[#allocation11 + $0x138] sm:$0xff]
    %v1639 = vld [vmem:[#allocation11 + $0x140] sm:$0xff]
    %v1640 = vld [vmem:[#allocation11 + $0x148] sm:$0xff]
    %v1641 = vld [vmem:[#allocation11 + $0x150] sm:$0xff]
    %v1642 = vld [vmem:[#allocation11 + $0x158] sm:$0xff]
    %v1643 = vld [vmem:[#allocation11 + $0x160] sm:$0xff]
    %v1644 = vld [vmem:[#allocation11 + $0x168] sm:$0xff]
    %v1645 = vld [vmem:[#allocation11 + $0x170] sm:$0xff]
    %v1646 = vld [vmem:[#allocation11 + $0x178] sm:$0xff]
    %v1647 = vld [vmem:[#allocation11 + $0x180] sm:$0xff]
    %v1648 = vld [vmem:[#allocation11 + $0x188] sm:$0xff]
    %v1649 = vld [vmem:[#allocation11 + $0x190] sm:$0xff]
    %v1650 = vld [vmem:[#allocation11 + $0x198] sm:$0xff]
    %v1651 = vld [vmem:[#allocation11 + $0x1a0] sm:$0xff]
    %v1652 = vld [vmem:[#allocation11 + $0x1a8] sm:$0xff]
    %v1653 = vld [vmem:[#allocation11 + $0x1b0] sm:$0xff]
    %v1654 = vld [vmem:[#allocation11 + $0x1b8] sm:$0xff]
    %v1655 = vld [vmem:[#allocation11 + $0x1c0] sm:$0xff]
    %v1656 = vld [vmem:[#allocation11 + $0x1c8] sm:$0xff]
    %v1657 = vld [vmem:[#allocation11 + $0x1d0] sm:$0xff]
    %v1658 = vld [vmem:[#allocation11 + $0x1d8] sm:$0xff]
    %v1659 = vld [vmem:[#allocation11 + $0x1e0] sm:$0xff]
    %v1660 = vld [vmem:[#allocation11 + $0x1e8] sm:$0xff]
    %v1661 = vld [vmem:[#allocation11 + $0x1f0] sm:$0xff]
    %v1662 = vld [vmem:[#allocation11 + $0x1f8] sm:$0xff]
    %v1663 = vld [vmem:[#allocation11 + $0x200] sm:$0xff]
    %v1664 = vld [vmem:[#allocation11 + $0x208] sm:$0xff]
    %v1665 = vld [vmem:[#allocation11 + $0x210] sm:$0xff]
    %v1666 = vld [vmem:[#allocation11 + $0x218] sm:$0xff]
    %v1667 = vld [vmem:[#allocation11 + $0x220] sm:$0xff]
    %v1668 = vld [vmem:[#allocation11 + $0x228] sm:$0xff]
    %v1669 = vld [vmem:[#allocation11 + $0x230] sm:$0xff]
    %v1670 = vld [vmem:[#allocation11 + $0x238] sm:$0xff]
    %v1671 = vld [vmem:[#allocation11 + $0x240] sm:$0xff]
    %v1672 = vld [vmem:[#allocation11 + $0x248] sm:$0xff]
    %v1673 = vld [vmem:[#allocation11 + $0x250] sm:$0xff]
    %v1674 = vld [vmem:[#allocation11 + $0x258] sm:$0xff]
    %v1675 = vld [vmem:[#allocation11 + $0x260] sm:$0xff]
    %v1676 = vld [vmem:[#allocation11 + $0x268] sm:$0xff]
    %v1677 = vld [vmem:[#allocation11 + $0x270] sm:$0xff]
    %v1678 = vld [vmem:[#allocation11 + $0x278] sm:$0xff]
    %v1679 = vld [vmem:[#allocation11 + $0x280] sm:$0xff]
    %v1680 = vld [vmem:[#allocation11 + $0x288] sm:$0xff]
    %v1681 = vld [vmem:[#allocation11 + $0x290] sm:$0xff]
    %v1682 = vld [vmem:[#allocation11 + $0x298] sm:$0xff]
    %v1683 = vld [vmem:[#allocation11 + $0x2a0] sm:$0xff]
    %v1684 = vld [vmem:[#allocation11 + $0x2a8] sm:$0xff]
    %v1685 = vld [vmem:[#allocation11 + $0x2b0] sm:$0xff]
    %v1686 = vld [vmem:[#allocation11 + $0x2b8] sm:$0xff]
    %v1687 = vld [vmem:[#allocation11 + $0x2c0] sm:$0xff]
    %v1688 = vld [vmem:[#allocation11 + $0x2c8] sm:$0xff]
    %v1689 = vld [vmem:[#allocation11 + $0x2d0] sm:$0xff]
    %v1690 = vld [vmem:[#allocation11 + $0x2d8] sm:$0xff]
    %v1691 = vld [vmem:[#allocation11 + $0x2e0] sm:$0xff]
    %v1692 = vld [vmem:[#allocation11 + $0x2e8] sm:$0xff]
    %v1693 = vld [vmem:[#allocation11 + $0x2f0] sm:$0xff]
    %v1694 = vld [vmem:[#allocation11 + $0x2f8] sm:$0xff]
    %v1695 = vld [vmem:[#allocation11 + $0x300] sm:$0xff]
    %v1696 = vld [vmem:[#allocation11 + $0x308] sm:$0xff]
    %v1697 = vld [vmem:[#allocation11 + $0x310] sm:$0xff]
    %v1698 = vld [vmem:[#allocation11 + $0x318] sm:$0xff]
    %v1699 = vld [vmem:[#allocation11 + $0x320] sm:$0xff]
    %v1700 = vld [vmem:[#allocation11 + $0x328] sm:$0xff]
    %v1701 = vld [vmem:[#allocation11 + $0x330] sm:$0xff]
    %v1702 = vld [vmem:[#allocation11 + $0x338] sm:$0xff]
    %v1703 = vld [vmem:[#allocation11 + $0x340] sm:$0xff]
    %v1704 = vld [vmem:[#allocation11 + $0x348] sm:$0xff]
    %v1705 = vld [vmem:[#allocation11 + $0x350] sm:$0xff]
    %v1706 = vld [vmem:[#allocation11 + $0x358] sm:$0xff]
    %v1707 = vld [vmem:[#allocation11 + $0x360] sm:$0xff]
    %v1708 = vld [vmem:[#allocation11 + $0x368] sm:$0xff]
    %v1709 = vld [vmem:[#allocation11 + $0x370] sm:$0xff]
    %v1710 = vld [vmem:[#allocation11 + $0x378] sm:$0xff]
    %v1711 = vld [vmem:[#allocation11 + $0x380] sm:$0xff]
    %v1712 = vld [vmem:[#allocation11 + $0x388] sm:$0xff]
    %v1713 = vld [vmem:[#allocation11 + $0x390] sm:$0xff]
    %v1714 = vld [vmem:[#allocation11 + $0x398] sm:$0xff]
    %v1715 = vld [vmem:[#allocation11 + $0x3a0] sm:$0xff]
    %v1716 = vld [vmem:[#allocation11 + $0x3a8] sm:$0xff]
    %v1717 = vld [vmem:[#allocation11 + $0x3b0] sm:$0xff]
    %v1718 = vld [vmem:[#allocation11 + $0x3b8] sm:$0xff]
    %v1719 = vld [vmem:[#allocation11 + $0x3c0] sm:$0xff]
    %v1720 = vld [vmem:[#allocation11 + $0x3c8] sm:$0xff]
    %v1721 = vld [vmem:[#allocation11 + $0x3d0] sm:$0xff]
    %v1722 = vld [vmem:[#allocation11 + $0x3d8] sm:$0xff]
    %v1723 = vld [vmem:[#allocation11 + $0x3e0] sm:$0xff]
    %v1724 = vld [vmem:[#allocation11 + $0x3e8] sm:$0xff]
    %v1725 = vld [vmem:[#allocation11 + $0x3f0] sm:$0xff]
    %v1726 = vld [vmem:[#allocation11 + $0x3f8] sm:$0xff]
    %v1728 = vlaneseq
    %v1729 = vshrl.u32 %v1728, 7
    %v1730 = vsub.s32 0, %v1729
    %v1731 = vrot.slane %v123, %v1730
    %v1732 = vlaneseq
    %v1733 = vshrl.u32 %v1732, 7
    %v1734 = vsub.s32 1, %v1733
    %v1735 = vrot.slane %v123, %v1734
    %1738 = vmatprep.subr.mxu0 %v1630
    %1739 = vmatpush1.msra.mxu0 %v1629
    %1740 = vmatprep.subr.mxu0 %v1628
    %1741 = vmatpush1.msra.mxu0 %v1627
    %1742 = vmatprep.subr.mxu0 %v1626
    %1743 = vmatpush1.msra.mxu0 %v1625
    %1744 = vmatprep.subr.mxu0 %v1624
    %1745 = vmatpush1.msra.mxu0 %v1623
    %1746 = vmatprep.subr.mxu0 %v1622
    %1747 = vmatpush1.msra.mxu0 %v1621
    %1748 = vmatprep.subr.mxu0 %v1620
    %1749 = vmatpush1.msra.mxu0 %v1619
    %1750 = vmatprep.subr.mxu0 %v1618
    %1751 = vmatpush1.msra.mxu0 %v1617
    %1752 = vmatprep.subr.mxu0 %v1616
    %1753 = vmatpush1.msra.mxu0 %v1615
    %1754 = vmatprep.subr.mxu0 %v1614
    %1755 = vmatpush1.msra.mxu0 %v1613
    %1756 = vmatprep.subr.mxu0 %v1612
    %1757 = vmatpush1.msra.mxu0 %v1611
    %1758 = vmatprep.subr.mxu0 %v1610
    %1759 = vmatpush1.msra.mxu0 %v1609
    %1760 = vmatprep.subr.mxu0 %v1608
    %1761 = vmatpush1.msra.mxu0 %v1607
    %1762 = vmatprep.subr.mxu0 %v1606
    %1763 = vmatpush1.msra.mxu0 %v1605
    %1764 = vmatprep.subr.mxu0 %v1604
    %1765 = vmatpush1.msra.mxu0 %v1603
    %1766 = vmatprep.subr.mxu0 %v1602
    %1767 = vmatpush1.msra.mxu0 %v1601
    %1768 = vmatprep.subr.mxu0 %v1600
    %1769 = vmatpush1.msra.mxu0 %v1599
    %1770 = vmatprep.subr.mxu0 %v1662
    %1771 = vmatpush2.msra.mxu0 %v1661
    %1772 = vmatprep.subr.mxu0 %v1660
    %1773 = vmatpush2.msra.mxu0 %v1659
    %1774 = vmatprep.subr.mxu0 %v1658
    %1775 = vmatpush2.msra.mxu0 %v1657
    %1776 = vmatprep.subr.mxu0 %v1656
    %1777 = vmatpush2.msra.mxu0 %v1655
    %1778 = vmatprep.subr.mxu0 %v1654
    %1779 = vmatpush2.msra.mxu0 %v1653
    %1780 = vmatprep.subr.mxu0 %v1652
    %1781 = vmatpush2.msra.mxu0 %v1651
    %1782 = vmatprep.subr.mxu0 %v1650
    %1783 = vmatpush2.msra.mxu0 %v1649
    %1784 = vmatprep.subr.mxu0 %v1648
    %1785 = vmatpush2.msra.mxu0 %v1647
    %1786 = vmatprep.subr.mxu0 %v1646
    %1787 = vmatpush2.msra.mxu0 %v1645
    %1788 = vmatprep.subr.mxu0 %v1644
    %1789 = vmatpush2.msra.mxu0 %v1643
    %1790 = vmatprep.subr.mxu0 %v1642
    %1791 = vmatpush2.msra.mxu0 %v1641
    %1792 = vmatprep.subr.mxu0 %v1640
    %1793 = vmatpush2.msra.mxu0 %v1639
    %1794 = vmatprep.subr.mxu0 %v1638
    %1795 = vmatpush2.msra.mxu0 %v1637
    %1796 = vmatprep.subr.mxu0 %v1636
    %1797 = vmatpush2.msra.mxu0 %v1635
    %1798 = vmatprep.subr.mxu0 %v1634
    %1799 = vmatpush2.msra.mxu0 %v1633
    %1800 = vmatprep.subr.mxu0 %v1632
    %1801 = vmatpush2.msra.mxu0 %v1631
    %1802 = vmatprep.mubr.f32.mxu0 %v1596
    %1803 = vmatmul.mubr.f32.gmra.mxu0 %v1595
    %v1804 = vpop.f32.mrf.mxu0
    %v1805 = vadd.f32 %v1731, %v1804
    %v1806 = vpop.f32.mrf.mxu0
    %v1807 = vadd.f32 %v1735, %v1806
    %1808 = vdwg.mxu0
    %1809 = vmatprep.subr.mxu0 %v1694
    %1810 = vmatpush1.msra.mxu0 %v1693
    %1811 = vmatprep.subr.mxu0 %v1692
    %1812 = vmatpush1.msra.mxu0 %v1691
    %1813 = vmatprep.subr.mxu0 %v1690
    %1814 = vmatpush1.msra.mxu0 %v1689
    %1815 = vmatprep.subr.mxu0 %v1688
    %1816 = vmatpush1.msra.mxu0 %v1687
    %1817 = vmatprep.subr.mxu0 %v1686
    %1818 = vmatpush1.msra.mxu0 %v1685
    %1819 = vmatprep.subr.mxu0 %v1684
    %1820 = vmatpush1.msra.mxu0 %v1683
    %1821 = vmatprep.subr.mxu0 %v1682
    %1822 = vmatpush1.msra.mxu0 %v1681
    %1823 = vmatprep.subr.mxu0 %v1680
    %1824 = vmatpush1.msra.mxu0 %v1679
    %1825 = vmatprep.subr.mxu0 %v1678
    %1826 = vmatpush1.msra.mxu0 %v1677
    %1827 = vmatprep.subr.mxu0 %v1676
    %1828 = vmatpush1.msra.mxu0 %v1675
    %1829 = vmatprep.subr.mxu0 %v1674
    %1830 = vmatpush1.msra.mxu0 %v1673
    %1831 = vmatprep.subr.mxu0 %v1672
    %1832 = vmatpush1.msra.mxu0 %v1671
    %1833 = vmatprep.subr.mxu0 %v1670
    %1834 = vmatpush1.msra.mxu0 %v1669
    %1835 = vmatprep.subr.mxu0 %v1668
    %1836 = vmatpush1.msra.mxu0 %v1667
    %1837 = vmatprep.subr.mxu0 %v1666
    %1838 = vmatpush1.msra.mxu0 %v1665
    %1839 = vmatprep.subr.mxu0 %v1664
    %1840 = vmatpush1.msra.mxu0 %v1663
    %1841 = vmatprep.subr.mxu0 %v1726
    %1842 = vmatpush2.msra.mxu0 %v1725
    %1843 = vmatprep.subr.mxu0 %v1724
    %1844 = vmatpush2.msra.mxu0 %v1723
    %1845 = vmatprep.subr.mxu0 %v1722
    %1846 = vmatpush2.msra.mxu0 %v1721
    %1847 = vmatprep.subr.mxu0 %v1720
    %1848 = vmatpush2.msra.mxu0 %v1719
    %1849 = vmatprep.subr.mxu0 %v1718
    %1850 = vmatpush2.msra.mxu0 %v1717
    %1851 = vmatprep.subr.mxu0 %v1716
    %1852 = vmatpush2.msra.mxu0 %v1715
    %1853 = vmatprep.subr.mxu0 %v1714
    %1854 = vmatpush2.msra.mxu0 %v1713
    %1855 = vmatprep.subr.mxu0 %v1712
    %1856 = vmatpush2.msra.mxu0 %v1711
    %1857 = vmatprep.subr.mxu0 %v1710
    %1858 = vmatpush2.msra.mxu0 %v1709
    %1859 = vmatprep.subr.mxu0 %v1708
    %1860 = vmatpush2.msra.mxu0 %v1707
    %1861 = vmatprep.subr.mxu0 %v1706
    %1862 = vmatpush2.msra.mxu0 %v1705
    %1863 = vmatprep.subr.mxu0 %v1704
    %1864 = vmatpush2.msra.mxu0 %v1703
    %1865 = vmatprep.subr.mxu0 %v1702
    %1866 = vmatpush2.msra.mxu0 %v1701
    %1867 = vmatprep.subr.mxu0 %v1700
    %1868 = vmatpush2.msra.mxu0 %v1699
    %1869 = vmatprep.subr.mxu0 %v1698
    %1870 = vmatpush2.msra.mxu0 %v1697
    %1871 = vmatprep.subr.mxu0 %v1696
    %1872 = vmatpush2.msra.mxu0 %v1695
    %1873 = vmatprep.mubr.f32.mxu0 %v1598
    %1874 = vmatmul.mubr.f32.gmra.mxu0 %v1597
    %v1875 = vpop.f32.mrf.mxu0
    %v1876 = vadd.f32 %v1805, %v1875
    %v1877 = vpop.f32.mrf.mxu0
    %v1878 = vadd.f32 %v1807, %v1877
    %1879 = vdwg.mxu0
    %v1880 = vmax.f32 %v1876, 0.0
    %v1881 = vmax.f32 %v1878, 0.0
    %v1882 = vld [vmem:[%s7] sm:$0xff]
    %v1883 = vld [vmem:[%s7 + $0x8] sm:$0xff]
    %v1884 = vld [vmem:[%s7 + $0x10] sm:$0xff]
    %v1885 = vld [vmem:[%s7 + $0x18] sm:$0xff]
    %v1886 = vld [vmem:[%s7 + $0x20] sm:$0xff]
    %v1887 = vld [vmem:[%s7 + $0x28] sm:$0xff]
    %v1888 = vld [vmem:[%s7 + $0x30] sm:$0xff]
    %v1889 = vld [vmem:[%s7 + $0x38] sm:$0xff]
    %v1890 = vld [vmem:[%s7 + $0x40] sm:$0xff]
    %v1891 = vld [vmem:[%s7 + $0x48] sm:$0xff]
    %v1892 = vld [vmem:[%s7 + $0x50] sm:$0xff]
    %v1893 = vld [vmem:[%s7 + $0x58] sm:$0xff]
    %v1894 = vld [vmem:[%s7 + $0x60] sm:$0xff]
    %v1895 = vld [vmem:[%s7 + $0x68] sm:$0xff]
    %v1896 = vld [vmem:[%s7 + $0x70] sm:$0xff]
    %v1897 = vld [vmem:[%s7 + $0x78] sm:$0xff]
    %v1898 = vld [vmem:[%s7 + $0x80] sm:$0xff]
    %v1899 = vld [vmem:[%s7 + $0x88] sm:$0xff]
    %v1900 = vld [vmem:[%s7 + $0x90] sm:$0xff]
    %v1901 = vld [vmem:[%s7 + $0x98] sm:$0xff]
    %v1902 = vld [vmem:[%s7 + $0xa0] sm:$0xff]
    %v1903 = vld [vmem:[%s7 + $0xa8] sm:$0xff]
    %v1904 = vld [vmem:[%s7 + $0xb0] sm:$0xff]
    %v1905 = vld [vmem:[%s7 + $0xb8] sm:$0xff]
    %v1906 = vld [vmem:[%s7 + $0xc0] sm:$0xff]
    %v1907 = vld [vmem:[%s7 + $0xc8] sm:$0xff]
    %v1908 = vld [vmem:[%s7 + $0xd0] sm:$0xff]
    %v1909 = vld [vmem:[%s7 + $0xd8] sm:$0xff]
    %v1910 = vld [vmem:[%s7 + $0xe0] sm:$0xff]
    %v1911 = vld [vmem:[%s7 + $0xe8] sm:$0xff]
    %v1912 = vld [vmem:[%s7 + $0xf0] sm:$0xff]
    %v1913 = vld [vmem:[%s7 + $0xf8] sm:$0xff]
    %v1914 = vld [vmem:[%s7 + $0x100] sm:$0xff]
    %v1915 = vld [vmem:[%s7 + $0x108] sm:$0xff]
    %v1916 = vld [vmem:[%s7 + $0x110] sm:$0xff]
    %v1917 = vld [vmem:[%s7 + $0x118] sm:$0xff]
    %v1918 = vld [vmem:[%s7 + $0x120] sm:$0xff]
    %v1919 = vld [vmem:[%s7 + $0x128] sm:$0xff]
    %v1920 = vld [vmem:[%s7 + $0x130] sm:$0xff]
    %v1921 = vld [vmem:[%s7 + $0x138] sm:$0xff]
    %v1922 = vld [vmem:[%s7 + $0x140] sm:$0xff]
    %v1923 = vld [vmem:[%s7 + $0x148] sm:$0xff]
    %v1924 = vld [vmem:[%s7 + $0x150] sm:$0xff]
    %v1925 = vld [vmem:[%s7 + $0x158] sm:$0xff]
    %v1926 = vld [vmem:[%s7 + $0x160] sm:$0xff]
    %v1927 = vld [vmem:[%s7 + $0x168] sm:$0xff]
    %v1928 = vld [vmem:[%s7 + $0x170] sm:$0xff]
    %v1929 = vld [vmem:[%s7 + $0x178] sm:$0xff]
    %v1930 = vld [vmem:[%s7 + $0x180] sm:$0xff]
    %v1931 = vld [vmem:[%s7 + $0x188] sm:$0xff]
    %v1932 = vld [vmem:[%s7 + $0x190] sm:$0xff]
    %v1933 = vld [vmem:[%s7 + $0x198] sm:$0xff]
    %v1934 = vld [vmem:[%s7 + $0x1a0] sm:$0xff]
    %v1935 = vld [vmem:[%s7 + $0x1a8] sm:$0xff]
    %v1936 = vld [vmem:[%s7 + $0x1b0] sm:$0xff]
    %v1937 = vld [vmem:[%s7 + $0x1b8] sm:$0xff]
    %v1938 = vld [vmem:[%s7 + $0x1c0] sm:$0xff]
    %v1939 = vld [vmem:[%s7 + $0x1c8] sm:$0xff]
    %v1940 = vld [vmem:[%s7 + $0x1d0] sm:$0xff]
    %v1941 = vld [vmem:[%s7 + $0x1d8] sm:$0xff]
    %v1942 = vld [vmem:[%s7 + $0x1e0] sm:$0xff]
    %v1943 = vld [vmem:[%s7 + $0x1e8] sm:$0xff]
    %v1944 = vld [vmem:[%s7 + $0x1f0] sm:$0xff]
    %v1945 = vld [vmem:[%s7 + $0x1f8] sm:$0xff]
    %v1947 = vlaneseq
    %v1948 = vshrl.u32 %v1947, 7
    %v1949 = vsub.s32 0, %v1948
    %v1950 = vrot.slane %v124, %v1949
    %v1951 = vlaneseq
    %v1952 = vshrl.u32 %v1951, 7
    %v1953 = vsub.s32 1, %v1952
    %v1954 = vrot.slane %v124, %v1953
    %1957 = vmatprep.subr.mxu0 %v1913
    %1958 = vmatpush1.msra.mxu0 %v1912
    %1959 = vmatprep.subr.mxu0 %v1911
    %1960 = vmatpush1.msra.mxu0 %v1910
    %1961 = vmatprep.subr.mxu0 %v1909
    %1962 = vmatpush1.msra.mxu0 %v1908
    %1963 = vmatprep.subr.mxu0 %v1907
    %1964 = vmatpush1.msra.mxu0 %v1906
    %1965 = vmatprep.subr.mxu0 %v1905
    %1966 = vmatpush1.msra.mxu0 %v1904
    %1967 = vmatprep.subr.mxu0 %v1903
    %1968 = vmatpush1.msra.mxu0 %v1902
    %1969 = vmatprep.subr.mxu0 %v1901
    %1970 = vmatpush1.msra.mxu0 %v1900
    %1971 = vmatprep.subr.mxu0 %v1899
    %1972 = vmatpush1.msra.mxu0 %v1898
    %1973 = vmatprep.subr.mxu0 %v1897
    %1974 = vmatpush1.msra.mxu0 %v1896
    %1975 = vmatprep.subr.mxu0 %v1895
    %1976 = vmatpush1.msra.mxu0 %v1894
    %1977 = vmatprep.subr.mxu0 %v1893
    %1978 = vmatpush1.msra.mxu0 %v1892
    %1979 = vmatprep.subr.mxu0 %v1891
    %1980 = vmatpush1.msra.mxu0 %v1890
    %1981 = vmatprep.subr.mxu0 %v1889
    %1982 = vmatpush1.msra.mxu0 %v1888
    %1983 = vmatprep.subr.mxu0 %v1887
    %1984 = vmatpush1.msra.mxu0 %v1886
    %1985 = vmatprep.subr.mxu0 %v1885
    %1986 = vmatpush1.msra.mxu0 %v1884
    %1987 = vmatprep.subr.mxu0 %v1883
    %1988 = vmatpush1.msra.mxu0 %v1882
    %1989 = vmatprep.subr.mxu0 %v1945
    %1990 = vmatpush2.msra.mxu0 %v1944
    %1991 = vmatprep.subr.mxu0 %v1943
    %1992 = vmatpush2.msra.mxu0 %v1942
    %1993 = vmatprep.subr.mxu0 %v1941
    %1994 = vmatpush2.msra.mxu0 %v1940
    %1995 = vmatprep.subr.mxu0 %v1939
    %1996 = vmatpush2.msra.mxu0 %v1938
    %1997 = vmatprep.subr.mxu0 %v1937
    %1998 = vmatpush2.msra.mxu0 %v1936
    %1999 = vmatprep.subr.mxu0 %v1935
    %2000 = vmatpush2.msra.mxu0 %v1934
    %2001 = vmatprep.subr.mxu0 %v1933
    %2002 = vmatpush2.msra.mxu0 %v1932
    %2003 = vmatprep.subr.mxu0 %v1931
    %2004 = vmatpush2.msra.mxu0 %v1930
    %2005 = vmatprep.subr.mxu0 %v1929
    %2006 = vmatpush2.msra.mxu0 %v1928
    %2007 = vmatprep.subr.mxu0 %v1927
    %2008 = vmatpush2.msra.mxu0 %v1926
    %2009 = vmatprep.subr.mxu0 %v1925
    %2010 = vmatpush2.msra.mxu0 %v1924
    %2011 = vmatprep.subr.mxu0 %v1923
    %2012 = vmatpush2.msra.mxu0 %v1922
    %2013 = vmatprep.subr.mxu0 %v1921
    %2014 = vmatpush2.msra.mxu0 %v1920
    %2015 = vmatprep.subr.mxu0 %v1919
    %2016 = vmatpush2.msra.mxu0 %v1918
    %2017 = vmatprep.subr.mxu0 %v1917
    %2018 = vmatpush2.msra.mxu0 %v1916
    %2019 = vmatprep.subr.mxu0 %v1915
    %2020 = vmatpush2.msra.mxu0 %v1914
    %2021 = vmatprep.mubr.f32.mxu0 %v1881
    %2022 = vmatmul.mubr.f32.gmra.mxu0 %v1880
    %v2023 = vpop.f32.mrf.mxu0
    %v2024 = vadd.f32 %v1950, %v2023
    %v2025 = vpop.f32.mrf.mxu0
    %v2026 = vadd.f32 %v1954, %v2025
    %2027 = vdwg.mxu0
    %v2028 = vmul.f32 %v2024, %v2024
    %v2029 = vmul.f32 %v2026, %v2026
    %v2030 = vadd.f32 %v2028, %v2029
    %2031 = vadd.xlane.f32.xlu0 %v2030
    %v2032 = vpop.xlane.xlu0 %2031
    %v2033 = vmax.f32 %v2032, 1e-24
    %v2034 = vrsqrt.pop %v2033
    %v2035 = vmul.f32 %v2024, %v2034
    %v2036 = vmul.f32 %v2026, %v2034
    %2037 = vst [vmem:[#allocation14] sm:$0xff] %v2035
    %2038 = vst [vmem:[#allocation14 + $0x8] sm:$0xff] %v2036
    // Predicated region
    $region66: #{embedding_net_forward.1} parent=1 // pred_check
      _
    $region67: #{embedding_net_forward.1} parent=1 // pred_check_branch
      %2040 = sbr.rel (0) target = $region69
    $region68: #{embedding_net_forward.1} parent=1 // pred_region
      %s2042 = ssub.s32 256, 256
      %2043 = vsyncadd [#allocation4], %s2042
      %s2045 = sshll.u32 [#allocation14], 4
      %s2046 = int_to_ptr.vmem [resolvable:$true] %s2045
      %2048 = dma.vmem_to_hbm [thread:$0]  %s2046, 256, %s9, [#allocation4]
    $region69: #{embedding_net_forward.1} parent=1 // pred_fallthru
      _
    // Predicated region
    $region70: #{embedding_net_forward.1} parent=1 // pred_check
      _
    $region71: #{embedding_net_forward.1} parent=1 // pred_check_branch
      %2050 = sbr.rel (0) target = $region73
    $region72: #{embedding_net_forward.1} parent=1 // pred_region
      %2051 = dma.done [#allocation4], 256
    $region73: #{embedding_net_forward.1} parent=1 // pred_fallthru
      _
    %2052 = vsyncpa [#allocation3], 1
    %2053 = vsyncpa [#allocation6], 1
    %2054 = vsyncpa [#allocation9], 1
    %2055 = vsyncpa [#allocation12], 1
    %2056 = vsyncpa [#allocation4], 1

</llo_original>
